<compile_context>
chip_gen: v6e
topology: v6e:2x2x1
jax: 0.10.0
libtpu: 0.0.40
codegen_flags: <defaults>
</compile_context>

<pallas_src>
import functools

import jax
import jax.numpy as jnp
from jax.experimental import pallas as pl
from jax.experimental.pallas import tpu as pltpu

LANE = 128


def _round_up(x, m):
    return ((x + m - 1) // m) * m


def _pad2d(a, rows, cols):
    """Zero-pad a 2-D array up to (rows, cols)."""
    return jnp.zeros((rows, cols), jnp.float32).at[: a.shape[0], : a.shape[1]].set(a)


# ----------------------------------------------------------------------------
# Fused kernel: grid = (num_layers, num_row_tiles)
# ----------------------------------------------------------------------------
def make_fused_kernel(num_graphs, tile_m):
    def kernel(x_ref, adj_ref, mask_ref, newsx_ref,
               wl_ref, bl_ref, wr_ref,
               w2_ref, b2_ref, wn_ref, bn_ref, w3h_ref, w3n_ref, b3_ref,
               out_ref, h_buf):
        l = pl.program_id(0)          # layer index
        i = pl.program_id(1)          # row-tile index
        n_layers = pl.num_programs(0)
        n_tiles = pl.num_programs(1)

        # Load the (padded) node features into the layer-0 buffer once.
        @pl.when((l == 0) & (i == 0))
        def _():
            h_buf[0] = x_ref[...]

        src = l % 2                   # buffer holding layer-l input
        dst = (l + 1) % 2             # buffer receiving layer-l output
        row0 = pl.multiple_of(i * tile_m, 8)

        src_view = h_buf.at[src]
        h_full = src_view[...]                        # [N, P]  full previous-layer h
        h_rows = src_view[pl.ds(row0, tile_m), :]     # [TM, P] rows owned by this tile

        # ---- SAGEConv: mean aggregation + root weight + bias -------------------
        adj = adj_ref[...]                            # [TM, N] bf16 (0/1, exact)
        deg = jnp.sum(adj.astype(jnp.float32), axis=1, keepdims=True)
        inv_deg = jnp.where(deg > 0.0, 1.0 / deg, 0.0)   # isolated node -> agg = 0

        agg = jnp.dot(adj, h_full.astype(jnp.bfloat16),
                      preferred_element_type=jnp.float32) * inv_deg      # [TM, P]
        z = (jnp.dot(agg, wl_ref[0], preferred_element_type=jnp.float32)
             + bl_ref[0]
             + jnp.dot(h_rows, wr_ref[0], preferred_element_type=jnp.float32))

        # normalize=True  ->  F.normalize(z, p=2, dim=-1)   (eps = 1e-12)
        sumsq = jnp.sum(z * z, axis=-1, keepdims=True)
        z = z * jax.lax.rsqrt(jnp.maximum(sumsq, 1e-24))
        h_new = jnp.maximum(z, 0.0)                   # .relu() between layers

        dst_view = h_buf.at[dst]
        dst_view[pl.ds(row0, tile_m), :] = h_new

        # ---- head: runs once, after the last row tile of the last layer --------
        @pl.when((l == n_layers - 1) & (i == n_tiles - 1))
        def _():
            hf = h_buf.at[dst][...]                   # [N, P] final node features (>= 0)

            # global_max_pool without the [G, N, H] broadcast: static loop over
            # graphs, 2-D masked max each.  Masking to 0 is exact because hf >= 0
            # and every graph has at least one node.
            pooled_rows = []
            for g in range(num_graphs):
                mg = mask_ref[g]                      # [N, 1]
                pooled_rows.append(
                    jnp.max(jnp.where(mg > 0.0, hf, 0.0), axis=0, keepdims=True))
            pooled = jnp.concatenate(pooled_rows, axis=0)          # [G, P]

            hg = jnp.maximum(
                jnp.dot(pooled, w2_ref[...], preferred_element_type=jnp.float32)
                + b2_ref[...], 0.0)
            news = jnp.maximum(
                jnp.dot(newsx_ref[...], wn_ref[...], preferred_element_type=jnp.float32)
                + bn_ref[...], 0.0)
            logits = (jnp.dot(hg, w3h_ref[...], preferred_element_type=jnp.float32)
                      + jnp.dot(news, w3n_ref[...], preferred_element_type=jnp.float32)
                      + b3_ref[...])
            out_ref[...] = jax.nn.sigmoid(logits)

    return kernel


# ----------------------------------------------------------------------------
# Parameter init (PyTorch-Linear-style U(-1/sqrt(fan_in), +...)).
# Weights stored as [in, out] for right-multiplication.
# ----------------------------------------------------------------------------
def linear_params(key, fan_in, fan_out, bias=True):
    kw, kb = jax.random.split(key)
    bound = 1.0 / jnp.sqrt(jnp.float32(fan_in))
    w = jax.random.uniform(kw, (fan_in, fan_out), jnp.float32, -bound, bound)
    if not bias:
        return w
    b = jax.random.uniform(kb, (1, fan_out), jnp.float32, -bound, bound)
    return w, b


def init_params(key, in_c, hid_c, out_c, num_layers=3):
    keys = jax.random.split(key, 2 * num_layers + 3)
    sage = []
    d_in = in_c
    for layer in range(num_layers):
        w_l, b_l = linear_params(keys[2 * layer], d_in, hid_c)            # lin_l (bias)
        w_r = linear_params(keys[2 * layer + 1], d_in, hid_c, bias=False)  # lin_r (no bias)
        sage.append((w_l, b_l, w_r))
        d_in = hid_c
    w_news, b_news = linear_params(keys[-3], in_c, hid_c)
    w_lin2, b_lin2 = linear_params(keys[-2], hid_c, hid_c)
    w_lin3, b_lin3 = linear_params(keys[-1], 2 * hid_c, out_c)
    return dict(sage=sage, w_news=w_news, b_news=b_news,
                w_lin2=w_lin2, b_lin2=b_lin2, w_lin3=w_lin3, b_lin3=b_lin3)


# ----------------------------------------------------------------------------
# Full forward: light JAX glue (padding, mask, root gather) + one fused kernel.
# Assumes `batch` is sorted/contiguous (as in the reference root computation).
# ----------------------------------------------------------------------------
@functools.partial(jax.jit, static_argnames=("num_graphs",))
def graphsage_forward(params, x, adj, batch, num_graphs):
    n, in_c = x.shape
    hid = params["w_lin2"].shape[0]
    out_c = params["w_lin3"].shape[1]
    num_layers = len(params["sage"])

    feat_p = _round_up(max(in_c, hid), LANE)   # single lane-dense feature width
    out_p = _round_up(out_c, LANE)

    tile_m = min(n, 256)                       # adj row tile (bounds VMEM for large N)
    if n % tile_m != 0:
        tile_m = n                             # fall back to one tile for odd sizes
    n_tiles = n // tile_m

    # ---- glue: pad / cast / masks / root gather (torch.nonzero equivalent) ----
    x_pad = _pad2d(x, n, feat_p)
    adj_bf16 = adj.astype(jnp.bfloat16)        # 0/1 values: exact in bf16

    gids = jnp.arange(num_graphs, dtype=batch.dtype)
    mask3 = (batch[None, :] == gids[:, None]).astype(jnp.float32)[:, :, None]  # [G,N,1]

    diff = batch[1:] - batch[:-1]
    root_tail = jnp.nonzero(diff, size=num_graphs - 1)[0].astype(jnp.int32) + 1
    root = jnp.concatenate([jnp.zeros((1,), jnp.int32), root_tail])
    newsx = x_pad[root]                                                       # [G, P]

    # stacked, zero-padded per-layer SAGEConv weights: [L, P, P] / [L, 1, P]
    wl = jnp.stack([_pad2d(w, feat_p, feat_p) for (w, _, _) in params["sage"]])
    bl = jnp.stack([_pad2d(b, 1, feat_p) for (_, b, _) in params["sage"]])
    wr = jnp.stack([_pad2d(w, feat_p, feat_p) for (_, _, w) in params["sage"]])

    w2 = _pad2d(params["w_lin2"], feat_p, feat_p)
    b2 = _pad2d(params["b_lin2"], 1, feat_p)
    wn = _pad2d(params["w_news"], feat_p, feat_p)
    bn = _pad2d(params["b_news"], 1, feat_p)
    w3h = _pad2d(params["w_lin3"][:hid], feat_p, out_p)
    w3n = _pad2d(params["w_lin3"][hid:], feat_p, out_p)
    b3 = _pad2d(params["b_lin3"], 1, out_p)

    kernel = make_fused_kernel(num_graphs, tile_m)

    in_specs = [
        pl.BlockSpec((n, feat_p), lambda l, i: (0, 0)),             # x (padded)
        pl.BlockSpec((tile_m, n), lambda l, i: (i, 0)),             # adj rows (bf16)
        pl.BlockSpec((num_graphs, n, 1), lambda l, i: (0, 0, 0)),   # graph mask
        pl.BlockSpec((num_graphs, feat_p), lambda l, i: (0, 0)),    # x[root]
        pl.BlockSpec((1, feat_p, feat_p), lambda l, i: (l, 0, 0)),  # W_l (per layer)
        pl.BlockSpec((1, 1, feat_p), lambda l, i: (l, 0, 0)),       # b_l
        pl.BlockSpec((1, feat_p, feat_p), lambda l, i: (l, 0, 0)),  # W_r
        pl.BlockSpec((feat_p, feat_p), lambda l, i: (0, 0)),        # lin2 W
        pl.BlockSpec((1, feat_p), lambda l, i: (0, 0)),             # lin2 b
        pl.BlockSpec((feat_p, feat_p), lambda l, i: (0, 0)),        # linnews W
        pl.BlockSpec((1, feat_p), lambda l, i: (0, 0)),             # linnews b
        pl.BlockSpec((feat_p, out_p), lambda l, i: (0, 0)),         # lin3 W (pooled half)
        pl.BlockSpec((feat_p, out_p), lambda l, i: (0, 0)),         # lin3 W (news half)
        pl.BlockSpec((1, out_p), lambda l, i: (0, 0)),              # lin3 b
    ]
    out_spec = pl.BlockSpec((num_graphs, out_p), lambda l, i: (0, 0))

    out_padded = pl.pallas_call(
        kernel,
        out_shape=jax.ShapeDtypeStruct((num_graphs, out_p), jnp.float32),
        grid_spec=pltpu.PrefetchScalarGridSpec(
            num_scalar_prefetch=0,
            grid=(num_layers, n_tiles),
            in_specs=in_specs,
            out_specs=out_spec,
            scratch_shapes=[pltpu.VMEM((2, n, feat_p), jnp.float32)],  # h ping-pong
        ),
        compiler_params=pltpu.CompilerParams(
            # Layer l+1 reads every row tile written at layer l from the VMEM
            # scratch -> both grid axes must stay sequential ("arbitrary").
            dimension_semantics=("arbitrary", "arbitrary"),
        ),
    )(x_pad, adj_bf16, mask3, newsx, wl, bl, wr, w2, b2, wn, bn, w3h, w3n, b3)

    return out_padded[:, :out_c]


# ----------------------------------------------------------------------------
# Pure-JAX reference (f32) for a sanity check.
# ----------------------------------------------------------------------------
def reference_forward(params, x, adj, batch, num_graphs):
    deg = jnp.sum(adj, axis=1, keepdims=True)
    inv_deg = jnp.where(deg > 0, 1.0 / deg, 0.0)
    h = x
    for (w_l, b_l, w_r) in params["sage"]:
        agg = (adj @ h) * inv_deg
        z = agg @ w_l + b_l + h @ w_r
        z = z / jnp.maximum(jnp.linalg.norm(z, axis=-1, keepdims=True), 1e-12)
        h = jnp.maximum(z, 0.0)
    mask = batch[None, :] == jnp.arange(num_graphs, dtype=batch.dtype)[:, None]
    pooled = jnp.max(jnp.where(mask[:, :, None], h[None], -jnp.inf), axis=1)
    hg = jnp.maximum(pooled @ params["w_lin2"] + params["b_lin2"], 0.0)
    diff = batch[1:] - batch[:-1]
    root = jnp.concatenate(
        [jnp.zeros((1,), jnp.int32),
         (jnp.nonzero(diff, size=num_graphs - 1)[0] + 1).astype(jnp.int32)])
    news = jnp.maximum(x[root] @ params["w_news"] + params["b_news"], 0.0)
    logits = jnp.concatenate([hg, news], axis=-1) @ params["w_lin3"] + params["b_lin3"]
    return jax.nn.sigmoid(logits)


if __name__ == "__main__":
    # Small, deterministic problem: 4 graphs x 8 nodes = 32 nodes.
    N, G = 32, 4
    IN_C, HID_C, OUT_C = 8, 32, 2

    key = jax.random.PRNGKey(0)
    k_x, k_adj, k_par = jax.random.split(key, 3)

    x = jax.random.normal(k_x, (N, IN_C), jnp.float32)
    adj = (jax.random.uniform(k_adj, (N, N)) < 0.3).astype(jnp.float32)
    adj = adj * (1.0 - jnp.eye(N, dtype=jnp.float32))              # no self loops
    batch = jnp.repeat(jnp.arange(G, dtype=jnp.int32), N // G)     # sorted graph ids

    params = init_params(k_par, IN_C, HID_C, OUT_C, num_layers=3)

    out = graphsage_forward(params, x, adj, batch, num_graphs=G)
    out = jax.block_until_ready(out)

    ref = reference_forward(params, x, adj, batch, G)

    assert out.shape == (G, OUT_C)
    assert bool(jnp.all(jnp.isfinite(out)))
    assert bool(jnp.all((out >= 0.0) & (out <= 1.0)))
    # bf16 is only used for the adj @ h aggregation operands (f32 accumulate),
    # so the fused kernel should track the f32 reference closely.
    assert bool(jnp.max(jnp.abs(out - ref)) < 5e-2)
    print("KERNEL_OK")
</pallas_src>

<mosaic_0001>
module attributes {stable_mosaic.version = 11 : i64} {
  func.func @kernel(%arg0: i32, %arg1: i32, %arg2: memref<32x128xf32, #tpu.memory_space<vmem>>, %arg3: memref<32x32xbf16, #tpu.memory_space<vmem>>, %arg4: memref<4x32x1xf32, #tpu.memory_space<vmem>>, %arg5: memref<4x128xf32, #tpu.memory_space<vmem>>, %arg6: memref<1x128x128xf32, #tpu.memory_space<vmem>>, %arg7: memref<1x1x128xf32, #tpu.memory_space<vmem>>, %arg8: memref<1x128x128xf32, #tpu.memory_space<vmem>>, %arg9: memref<128x128xf32, #tpu.memory_space<vmem>>, %arg10: memref<1x128xf32, #tpu.memory_space<vmem>>, %arg11: memref<128x128xf32, #tpu.memory_space<vmem>>, %arg12: memref<1x128xf32, #tpu.memory_space<vmem>>, %arg13: memref<128x128xf32, #tpu.memory_space<vmem>>, %arg14: memref<128x128xf32, #tpu.memory_space<vmem>>, %arg15: memref<1x128xf32, #tpu.memory_space<vmem>>, %arg16: memref<4x128xf32, #tpu.memory_space<vmem>>, %arg17: memref<2x32x128xf32, #tpu.memory_space<vmem>>) attributes {dimension_semantics = [#tpu.dimension_semantics<arbitrary>, #tpu.dimension_semantics<arbitrary>], iteration_bounds = array<i64: 3, 1>, scalar_prefetch = 0 : i64, scratch_operands = 1 : i64, tpu.core_type = #tpu.core_type<tc>, window_params = [{pipeline_mode = #tpu.pipeline_mode<synchronous>, transform_indices = @transform_0, window_bounds = array<i64: 32, 128>}, {transform_indices = @transform_1, window_bounds = array<i64: 32, 32>}, {pipeline_mode = #tpu.pipeline_mode<synchronous>, transform_indices = @transform_2, window_bounds = array<i64: 4, 32, 1>}, {pipeline_mode = #tpu.pipeline_mode<synchronous>, transform_indices = @transform_3, window_bounds = array<i64: 4, 128>}, {transform_indices = @transform_4, window_bounds = array<i64: 1, 128, 128>}, {transform_indices = @transform_5, window_bounds = array<i64: 1, 1, 128>}, {transform_indices = @transform_6, window_bounds = array<i64: 1, 128, 128>}, {pipeline_mode = #tpu.pipeline_mode<synchronous>, transform_indices = @transform_7, window_bounds = array<i64: 128, 128>}, {pipeline_mode = #tpu.pipeline_mode<synchronous>, transform_indices = @transform_8, window_bounds = array<i64: 1, 128>}, {pipeline_mode = #tpu.pipeline_mode<synchronous>, transform_indices = @transform_9, window_bounds = array<i64: 128, 128>}, {pipeline_mode = #tpu.pipeline_mode<synchronous>, transform_indices = @transform_10, window_bounds = array<i64: 1, 128>}, {pipeline_mode = #tpu.pipeline_mode<synchronous>, transform_indices = @transform_11, window_bounds = array<i64: 128, 128>}, {pipeline_mode = #tpu.pipeline_mode<synchronous>, transform_indices = @transform_12, window_bounds = array<i64: 128, 128>}, {pipeline_mode = #tpu.pipeline_mode<synchronous>, transform_indices = @transform_13, window_bounds = array<i64: 1, 128>}, {pipeline_mode = #tpu.pipeline_mode<synchronous>, transform_indices = @transform_14, window_bounds = array<i64: 4, 128>}]} {
    %c0_i32 = arith.constant 0 : i32
    %0 = arith.cmpi eq, %arg0, %c0_i32 : i32
    %c0_i32_0 = arith.constant 0 : i32
    %1 = arith.cmpi eq, %arg1, %c0_i32_0 : i32
    %2 = arith.andi %0, %1 : i1
    %3 = arith.extui %2 : i1 to i32
    %c0_i32_1 = arith.constant 0 : i32
    %4 = arith.cmpi ne, %3, %c0_i32_1 : i32
    scf.if %4 {
      %c0_43 = arith.constant 0 : index
      %c0_44 = arith.constant 0 : index
      %79 = vector.load %arg2[%c0_43, %c0_44] : memref<32x128xf32, #tpu.memory_space<vmem>>, vector<32x128xf32>
      %c0_45 = arith.constant 0 : index
      %c0_46 = arith.constant 0 : index
      %c0_47 = arith.constant 0 : index
      %80 = vector.load %arg17[%c0_45, %c0_46, %c0_47] : memref<2x32x128xf32, #tpu.memory_space<vmem>>, vector<1x32x128xf32>
      %81 = vector.shape_cast %80 : vector<1x32x128xf32> to vector<32x128xf32>
      %82 = vector.shape_cast %79 : vector<32x128xf32> to vector<1x32x128xf32>
      tpu.vector_store %arg17[%c0_45, %c0_46, %c0_47], %82 {strides = array<i32>} : memref<2x32x128xf32, #tpu.memory_space<vmem>>, vector<1x32x128xf32>,
    } else {
    }
    %c2_i32 = arith.constant 2 : i32
    %c0_i32_2 = arith.constant 0 : i32
    %5 = arith.cmpi eq, %c2_i32, %c0_i32_2 : i32
    %c1_i32 = arith.constant 1 : i32
    %6 = arith.select %5, %c1_i32, %c2_i32 : i32
    %7 = arith.remsi %arg0, %6 : i32
    %c0_i32_3 = arith.constant 0 : i32
    %8 = arith.cmpi ne, %7, %c0_i32_3 : i32
    %c0_i32_4 = arith.constant 0 : i32
    %9 = arith.cmpi slt, %7, %c0_i32_4 : i32
    %c0_i32_5 = arith.constant 0 : i32
    %10 = arith.cmpi slt, %6, %c0_i32_5 : i32
    %11 = arith.xori %9, %10 : i1
    %12 = arith.andi %11, %8 : i1
    %13 = arith.addi %7, %6 : i32
    %14 = arith.select %12, %13, %7 : i32
    %c1_i32_6 = arith.constant 1 : i32
    %15 = arith.addi %arg0, %c1_i32_6 : i32
    %c2_i32_7 = arith.constant 2 : i32
    %c0_i32_8 = arith.constant 0 : i32
    %16 = arith.cmpi eq, %c2_i32_7, %c0_i32_8 : i32
    %c1_i32_9 = arith.constant 1 : i32
    %17 = arith.select %16, %c1_i32_9, %c2_i32_7 : i32
    %18 = arith.remsi %15, %17 : i32
    %c0_i32_10 = arith.constant 0 : i32
    %19 = arith.cmpi ne, %18, %c0_i32_10 : i32
    %c0_i32_11 = arith.constant 0 : i32
    %20 = arith.cmpi slt, %18, %c0_i32_11 : i32
    %c0_i32_12 = arith.constant 0 : i32
    %21 = arith.cmpi slt, %17, %c0_i32_12 : i32
    %22 = arith.xori %20, %21 : i1
    %23 = arith.andi %22, %19 : i1
    %24 = arith.addi %18, %17 : i32
    %25 = arith.select %23, %24, %18 : i32
    %c32_i32 = arith.constant 32 : i32
    %26 = arith.muli %arg1, %c32_i32 : i32
    %27 = tpu.assume_multiple %26, 8 : i32
    %28 = arith.index_cast %14 : i32 to index
    %c0 = arith.constant 0 : index
    %c0_13 = arith.constant 0 : index
    %29 = vector.load %arg17[%28, %c0, %c0_13] : memref<2x32x128xf32, #tpu.memory_space<vmem>>, vector<1x32x128xf32>
    %30 = vector.shape_cast %29 : vector<1x32x128xf32> to vector<32x128xf32>
    %c0_i32_14 = arith.constant 0 : i32
    %c0_i32_15 = arith.constant 0 : i32
    %31 = tpu.memref_slice %arg17[%14, %c0_i32_14, %c0_i32_15] : memref<2x32x128xf32, #tpu.memory_space<vmem>> -> memref<1x32x128xf32, #tpu.memory_space<vmem>>
    %32 = tpu.memref_squeeze %31 : memref<1x32x128xf32, #tpu.memory_space<vmem>> -> memref<32x128xf32, #tpu.memory_space<vmem>>
    %33 = arith.index_cast %27 : i32 to index
    %c0_16 = arith.constant 0 : index
    %34 = vector.load %32[%33, %c0_16] : memref<32x128xf32, #tpu.memory_space<vmem>>, vector<32x128xf32>
    %c0_17 = arith.constant 0 : index
    %c0_18 = arith.constant 0 : index
    %35 = vector.load %arg3[%c0_17, %c0_18] : memref<32x32xbf16, #tpu.memory_space<vmem>>, vector<32x32xbf16>
    %36 = arith.extf %35 : vector<32x32xbf16> to vector<32x32xf32>
    %cst = arith.constant dense<0.000000e+00> : vector<32xf32>
    %37 = vector.multi_reduction <add>, %36, %cst [1] : vector<32x32xf32> to vector<32xf32>
    %38 = vector.shape_cast %37 : vector<32xf32> to vector<32x1xf32>
    %cst_19 = arith.constant 0.000000e+00 : f32
    %39 = vector.broadcast %cst_19 : f32 to vector<32x1xf32>
    %40 = arith.cmpf ogt, %38, %39 : vector<32x1xf32>
    %cst_20 = arith.constant 1.000000e+00 : f32
    %41 = vector.broadcast %cst_20 : f32 to vector<32x1xf32>
    %42 = arith.divf %41, %38 : vector<32x1xf32>
    %cst_21 = arith.constant 0.000000e+00 : f32
    %43 = vector.broadcast %cst_21 : f32 to vector<32x1xf32>
    %44 = arith.select %40, %42, %43 : vector<32x1xi1>, vector<32x1xf32>
    %45 = arith.truncf %30 : vector<32x128xf32> to vector<32x128xbf16>
    %cst_22 = arith.constant dense<0.000000e+00> : vector<32x128xf32>
    %46 = tpu.matmul %35, %45, %cst_22 {dimension_numbers = #tpu.dot_dimension_numbers<[1], [0], [0], [1], [0, 0, 1, 1], [], []>} : vector<32x32xbf16>, vector<32x128xbf16>, vector<32x128xf32> -> vector<32x128xf32>
    %47 = vector.broadcast %44 : vector<32x1xf32> to vector<32x128xf32>
    %48 = arith.mulf %46, %47 : vector<32x128xf32>
    %c0_23 = arith.constant 0 : index
    %c0_24 = arith.constant 0 : index
    %c0_25 = arith.constant 0 : index
    %49 = vector.load %arg6[%c0_23, %c0_24, %c0_25] : memref<1x128x128xf32, #tpu.memory_space<vmem>>, vector<1x128x128xf32>
    %50 = vector.shape_cast %49 : vector<1x128x128xf32> to vector<128x128xf32>
    %cst_26 = arith.constant dense<0.000000e+00> : vector<32x128xf32>
    %51 = tpu.matmul %48, %50, %cst_26 {dimension_numbers = #tpu.dot_dimension_numbers<[1], [0], [0], [1], [0, 0, 1, 1], [], []>} : vector<32x128xf32>, vector<128x128xf32>, vector<32x128xf32> -> vector<32x128xf32>
    %c0_27 = arith.constant 0 : index
    %c0_28 = arith.constant 0 : index
    %c0_29 = arith.constant 0 : index
    %52 = vector.load %arg7[%c0_27, %c0_28, %c0_29] : memref<1x1x128xf32, #tpu.memory_space<vmem>>, vector<1x1x128xf32>
    %53 = vector.shape_cast %52 : vector<1x1x128xf32> to vector<1x128xf32>
    %54 = vector.broadcast %53 : vector<1x128xf32> to vector<32x128xf32>
    %55 = arith.addf %51, %54 : vector<32x128xf32>
    %c0_30 = arith.constant 0 : index
    %c0_31 = arith.constant 0 : index
    %c0_32 = arith.constant 0 : index
    %56 = vector.load %arg8[%c0_30, %c0_31, %c0_32] : memref<1x128x128xf32, #tpu.memory_space<vmem>>, vector<1x128x128xf32>
    %57 = vector.shape_cast %56 : vector<1x128x128xf32> to vector<128x128xf32>
    %cst_33 = arith.constant dense<0.000000e+00> : vector<32x128xf32>
    %58 = tpu.matmul %34, %57, %cst_33 {dimension_numbers = #tpu.dot_dimension_numbers<[1], [0], [0], [1], [0, 0, 1, 1], [], []>} : vector<32x128xf32>, vector<128x128xf32>, vector<32x128xf32> -> vector<32x128xf32>
    %59 = arith.addf %55, %58 : vector<32x128xf32>
    %60 = arith.mulf %59, %59 : vector<32x128xf32>
    %cst_34 = arith.constant dense<0.000000e+00> : vector<32xf32>
    %61 = vector.multi_reduction <add>, %60, %cst_34 [1] : vector<32x128xf32> to vector<32xf32>
    %62 = vector.shape_cast %61 : vector<32xf32> to vector<32x1xf32>
    %cst_35 = arith.constant 1.000000e-24 : f32
    %63 = vector.broadcast %cst_35 : f32 to vector<32x1xf32>
    %64 = arith.maximumf %62, %63 : vector<32x1xf32>
    %65 = math.rsqrt %64 : vector<32x1xf32>
    %66 = vector.broadcast %65 : vector<32x1xf32> to vector<32x128xf32>
    %67 = arith.mulf %59, %66 : vector<32x128xf32>
    %cst_36 = arith.constant 0.000000e+00 : f32
    %68 = vector.broadcast %cst_36 : f32 to vector<32x128xf32>
    %69 = arith.maximumf %67, %68 : vector<32x128xf32>
    %c0_i32_37 = arith.constant 0 : i32
    %c0_i32_38 = arith.constant 0 : i32
    %70 = tpu.memref_slice %arg17[%25, %c0_i32_37, %c0_i32_38] : memref<2x32x128xf32, #tpu.memory_space<vmem>> -> memref<1x32x128xf32, #tpu.memory_space<vmem>>
    %71 = tpu.memref_squeeze %70 : memref<1x32x128xf32, #tpu.memory_space<vmem>> -> memref<32x128xf32, #tpu.memory_space<vmem>>
    %72 = arith.index_cast %27 : i32 to index
    %c0_39 = arith.constant 0 : index
    %73 = vector.load %71[%72, %c0_39] : memref<32x128xf32, #tpu.memory_space<vmem>>, vector<32x128xf32>
    tpu.vector_store %71[%72, %c0_39], %69 {strides = array<i32>} : memref<32x128xf32, #tpu.memory_space<vmem>>, vector<32x128xf32>,
    %c2_i32_40 = arith.constant 2 : i32
    %74 = arith.cmpi eq, %arg0, %c2_i32_40 : i32
    %c0_i32_41 = arith.constant 0 : i32
    %75 = arith.cmpi eq, %arg1, %c0_i32_41 : i32
    %76 = arith.andi %74, %75 : i1
    %77 = arith.extui %76 : i1 to i32
    %c0_i32_42 = arith.constant 0 : i32
    %78 = arith.cmpi ne, %77, %c0_i32_42 : i32
    scf.if %78 {
      %79 = arith.index_cast %25 : i32 to index
      %c0_43 = arith.constant 0 : index
      %c0_44 = arith.constant 0 : index
      %80 = vector.load %arg17[%79, %c0_43, %c0_44] : memref<2x32x128xf32, #tpu.memory_space<vmem>>, vector<1x32x128xf32>
      %81 = vector.shape_cast %80 : vector<1x32x128xf32> to vector<32x128xf32>
      %c0_45 = arith.constant 0 : index
      %c0_46 = arith.constant 0 : index
      %c0_47 = arith.constant 0 : index
      %82 = vector.load %arg4[%c0_45, %c0_46, %c0_47] : memref<4x32x1xf32, #tpu.memory_space<vmem>>, vector<1x32x1xf32>
      %83 = vector.shape_cast %82 : vector<1x32x1xf32> to vector<32x1xf32>
      %cst_48 = arith.constant 0.000000e+00 : f32
      %84 = vector.broadcast %cst_48 : f32 to vector<32x1xf32>
      %85 = arith.cmpf ogt, %83, %84 : vector<32x1xf32>
      %cst_49 = arith.constant 0.000000e+00 : f32
      %86 = vector.shape_cast %85 : vector<32x1xi1> to vector<32x1xi1>
      %87 = vector.broadcast %86 : vector<32x1xi1> to vector<32x128xi1>
      %88 = vector.broadcast %cst_49 : f32 to vector<32x128xf32>
      %89 = arith.select %87, %81, %88 : vector<32x128xi1>, vector<32x128xf32>
      %cst_50 = arith.constant dense<0xFF800000> : vector<128xf32>
      %90 = vector.multi_reduction <maximumf>, %89, %cst_50 [0] : vector<32x128xf32> to vector<128xf32>
      %91 = vector.shape_cast %90 : vector<128xf32> to vector<1x128xf32>
      %c1 = arith.constant 1 : index
      %c0_51 = arith.constant 0 : index
      %c0_52 = arith.constant 0 : index
      %92 = vector.load %arg4[%c1, %c0_51, %c0_52] : memref<4x32x1xf32, #tpu.memory_space<vmem>>, vector<1x32x1xf32>
      %93 = vector.shape_cast %92 : vector<1x32x1xf32> to vector<32x1xf32>
      %cst_53 = arith.constant 0.000000e+00 : f32
      %94 = vector.broadcast %cst_53 : f32 to vector<32x1xf32>
      %95 = arith.cmpf ogt, %93, %94 : vector<32x1xf32>
      %cst_54 = arith.constant 0.000000e+00 : f32
      %96 = vector.shape_cast %95 : vector<32x1xi1> to vector<32x1xi1>
      %97 = vector.broadcast %96 : vector<32x1xi1> to vector<32x128xi1>
      %98 = vector.broadcast %cst_54 : f32 to vector<32x128xf32>
      %99 = arith.select %97, %81, %98 : vector<32x128xi1>, vector<32x128xf32>
      %cst_55 = arith.constant dense<0xFF800000> : vector<128xf32>
      %100 = vector.multi_reduction <maximumf>, %99, %cst_55 [0] : vector<32x128xf32> to vector<128xf32>
      %101 = vector.shape_cast %100 : vector<128xf32> to vector<1x128xf32>
      %c2 = arith.constant 2 : index
      %c0_56 = arith.constant 0 : index
      %c0_57 = arith.constant 0 : index
      %102 = vector.load %arg4[%c2, %c0_56, %c0_57] : memref<4x32x1xf32, #tpu.memory_space<vmem>>, vector<1x32x1xf32>
      %103 = vector.shape_cast %102 : vector<1x32x1xf32> to vector<32x1xf32>
      %cst_58 = arith.constant 0.000000e+00 : f32
      %104 = vector.broadcast %cst_58 : f32 to vector<32x1xf32>
      %105 = arith.cmpf ogt, %103, %104 : vector<32x1xf32>
      %cst_59 = arith.constant 0.000000e+00 : f32
      %106 = vector.shape_cast %105 : vector<32x1xi1> to vector<32x1xi1>
      %107 = vector.broadcast %106 : vector<32x1xi1> to vector<32x128xi1>
      %108 = vector.broadcast %cst_59 : f32 to vector<32x128xf32>
      %109 = arith.select %107, %81, %108 : vector<32x128xi1>, vector<32x128xf32>
      %cst_60 = arith.constant dense<0xFF800000> : vector<128xf32>
      %110 = vector.multi_reduction <maximumf>, %109, %cst_60 [0] : vector<32x128xf32> to vector<128xf32>
      %111 = vector.shape_cast %110 : vector<128xf32> to vector<1x128xf32>
      %c3 = arith.constant 3 : index
      %c0_61 = arith.constant 0 : index
      %c0_62 = arith.constant 0 : index
      %112 = vector.load %arg4[%c3, %c0_61, %c0_62] : memref<4x32x1xf32, #tpu.memory_space<vmem>>, vector<1x32x1xf32>
      %113 = vector.shape_cast %112 : vector<1x32x1xf32> to vector<32x1xf32>
      %cst_63 = arith.constant 0.000000e+00 : f32
      %114 = vector.broadcast %cst_63 : f32 to vector<32x1xf32>
      %115 = arith.cmpf ogt, %113, %114 : vector<32x1xf32>
      %cst_64 = arith.constant 0.000000e+00 : f32
      %116 = vector.shape_cast %115 : vector<32x1xi1> to vector<32x1xi1>
      %117 = vector.broadcast %116 : vector<32x1xi1> to vector<32x128xi1>
      %118 = vector.broadcast %cst_64 : f32 to vector<32x128xf32>
      %119 = arith.select %117, %81, %118 : vector<32x128xi1>, vector<32x128xf32>
      %cst_65 = arith.constant dense<0xFF800000> : vector<128xf32>
      %120 = vector.multi_reduction <maximumf>, %119, %cst_65 [0] : vector<32x128xf32> to vector<128xf32>
      %121 = vector.shape_cast %120 : vector<128xf32> to vector<1x128xf32>
      %122 = tpu.concatenate %91, %101, %111, %121 in 0 : vector<1x128xf32>, vector<1x128xf32>, vector<1x128xf32>, vector<1x128xf32> -> vector<4x128xf32>
      %c0_66 = arith.constant 0 : index
      %c0_67 = arith.constant 0 : index
      %123 = vector.load %arg9[%c0_66, %c0_67] : memref<128x128xf32, #tpu.memory_space<vmem>>, vector<128x128xf32>
      %cst_68 = arith.constant dense<0.000000e+00> : vector<4x128xf32>
      %124 = tpu.matmul %122, %123, %cst_68 {dimension_numbers = #tpu.dot_dimension_numbers<[1], [0], [0], [1], [0, 0, 1, 1], [], []>} : vector<4x128xf32>, vector<128x128xf32>, vector<4x128xf32> -> vector<4x128xf32>
      %c0_69 = arith.constant 0 : index
      %c0_70 = arith.constant 0 : index
      %125 = vector.load %arg10[%c0_69, %c0_70] : memref<1x128xf32, #tpu.memory_space<vmem>>, vector<1x128xf32>
      %126 = vector.broadcast %125 : vector<1x128xf32> to vector<4x128xf32>
      %127 = arith.addf %124, %126 : vector<4x128xf32>
      %cst_71 = arith.constant 0.000000e+00 : f32
      %128 = vector.broadcast %cst_71 : f32 to vector<4x128xf32>
      %129 = arith.maximumf %127, %128 : vector<4x128xf32>
      %c0_72 = arith.constant 0 : index
      %c0_73 = arith.constant 0 : index
      %130 = vector.load %arg5[%c0_72, %c0_73] : memref<4x128xf32, #tpu.memory_space<vmem>>, vector<4x128xf32>
      %c0_74 = arith.constant 0 : index
      %c0_75 = arith.constant 0 : index
      %131 = vector.load %arg11[%c0_74, %c0_75] : memref<128x128xf32, #tpu.memory_space<vmem>>, vector<128x128xf32>
      %cst_76 = arith.constant dense<0.000000e+00> : vector<4x128xf32>
      %132 = tpu.matmul %130, %131, %cst_76 {dimension_numbers = #tpu.dot_dimension_numbers<[1], [0], [0], [1], [0, 0, 1, 1], [], []>} : vector<4x128xf32>, vector<128x128xf32>, vector<4x128xf32> -> vector<4x128xf32>
      %c0_77 = arith.constant 0 : index
      %c0_78 = arith.constant 0 : index
      %133 = vector.load %arg12[%c0_77, %c0_78] : memref<1x128xf32, #tpu.memory_space<vmem>>, vector<1x128xf32>
      %134 = vector.broadcast %133 : vector<1x128xf32> to vector<4x128xf32>
      %135 = arith.addf %132, %134 : vector<4x128xf32>
      %cst_79 = arith.constant 0.000000e+00 : f32
      %136 = vector.broadcast %cst_79 : f32 to vector<4x128xf32>
      %137 = arith.maximumf %135, %136 : vector<4x128xf32>
      %c0_80 = arith.constant 0 : index
      %c0_81 = arith.constant 0 : index
      %138 = vector.load %arg13[%c0_80, %c0_81] : memref<128x128xf32, #tpu.memory_space<vmem>>, vector<128x128xf32>
      %cst_82 = arith.constant dense<0.000000e+00> : vector<4x128xf32>
      %139 = tpu.matmul %129, %138, %cst_82 {dimension_numbers = #tpu.dot_dimension_numbers<[1], [0], [0], [1], [0, 0, 1, 1], [], []>} : vector<4x128xf32>, vector<128x128xf32>, vector<4x128xf32> -> vector<4x128xf32>
      %c0_83 = arith.constant 0 : index
      %c0_84 = arith.constant 0 : index
      %140 = vector.load %arg14[%c0_83, %c0_84] : memref<128x128xf32, #tpu.memory_space<vmem>>, vector<128x128xf32>
      %cst_85 = arith.constant dense<0.000000e+00> : vector<4x128xf32>
      %141 = tpu.matmul %137, %140, %cst_85 {dimension_numbers = #tpu.dot_dimension_numbers<[1], [0], [0], [1], [0, 0, 1, 1], [], []>} : vector<4x128xf32>, vector<128x128xf32>, vector<4x128xf32> -> vector<4x128xf32>
      %142 = arith.addf %139, %141 : vector<4x128xf32>
      %c0_86 = arith.constant 0 : index
      %c0_87 = arith.constant 0 : index
      %143 = vector.load %arg15[%c0_86, %c0_87] : memref<1x128xf32, #tpu.memory_space<vmem>>, vector<1x128xf32>
      %144 = vector.broadcast %143 : vector<1x128xf32> to vector<4x128xf32>
      %145 = arith.addf %142, %144 : vector<4x128xf32>
      %146 = arith.negf %145 : vector<4x128xf32>
      %147 = math.exp %146 : vector<4x128xf32>
      %cst_88 = arith.constant 1.000000e+00 : f32
      %148 = vector.broadcast %cst_88 : f32 to vector<4x128xf32>
      %149 = arith.addf %148, %147 : vector<4x128xf32>
      %150 = arith.divf %148, %149 : vector<4x128xf32>
      %c0_89 = arith.constant 0 : index
      %c0_90 = arith.constant 0 : index
      %151 = vector.load %arg16[%c0_89, %c0_90] : memref<4x128xf32, #tpu.memory_space<vmem>>, vector<4x128xf32>
      tpu.vector_store %arg16[%c0_89, %c0_90], %150 {strides = array<i32>} : memref<4x128xf32, #tpu.memory_space<vmem>>, vector<4x128xf32>,
    } else {
    }
    return
  }
  func.func @transform_0(%arg0: i32, %arg1: i32) -> (i32, i32) {
    %c0_i32 = arith.constant 0 : i32
    %c0_i32_0 = arith.constant 0 : i32
    %c0_i32_1 = arith.constant 0 : i32
    return %c0_i32, %c0_i32_0 : i32, i32
  }
  func.func @transform_1(%arg0: i32, %arg1: i32) -> (i32, i32) {
    %c0_i32 = arith.constant 0 : i32
    %c0_i32_0 = arith.constant 0 : i32
    return %arg1, %c0_i32 : i32, i32
  }
  func.func @transform_2(%arg0: i32, %arg1: i32) -> (i32, i32, i32) {
    %c0_i32 = arith.constant 0 : i32
    %c0_i32_0 = arith.constant 0 : i32
    %c0_i32_1 = arith.constant 0 : i32
    %c0_i32_2 = arith.constant 0 : i32
    return %c0_i32, %c0_i32_0, %c0_i32_1 : i32, i32, i32
  }
  func.func @transform_3(%arg0: i32, %arg1: i32) -> (i32, i32) {
    %c0_i32 = arith.constant 0 : i32
    %c0_i32_0 = arith.constant 0 : i32
    %c0_i32_1 = arith.constant 0 : i32
    return %c0_i32, %c0_i32_0 : i32, i32
  }
  func.func @transform_4(%arg0: i32, %arg1: i32) -> (i32, i32, i32) {
    %c0_i32 = arith.constant 0 : i32
    %c0_i32_0 = arith.constant 0 : i32
    %c0_i32_1 = arith.constant 0 : i32
    return %arg0, %c0_i32, %c0_i32_0 : i32, i32, i32
  }
  func.func @transform_5(%arg0: i32, %arg1: i32) -> (i32, i32, i32) {
    %c0_i32 = arith.constant 0 : i32
    %c0_i32_0 = arith.constant 0 : i32
    %c0_i32_1 = arith.constant 0 : i32
    return %arg0, %c0_i32, %c0_i32_0 : i32, i32, i32
  }
  func.func @transform_6(%arg0: i32, %arg1: i32) -> (i32, i32, i32) {
    %c0_i32 = arith.constant 0 : i32
    %c0_i32_0 = arith.constant 0 : i32
    %c0_i32_1 = arith.constant 0 : i32
    return %arg0, %c0_i32, %c0_i32_0 : i32, i32, i32
  }
  func.func @transform_7(%arg0: i32, %arg1: i32) -> (i32, i32) {
    %c0_i32 = arith.constant 0 : i32
    %c0_i32_0 = arith.constant 0 : i32
    %c0_i32_1 = arith.constant 0 : i32
    return %c0_i32, %c0_i32_0 : i32, i32
  }
  func.func @transform_8(%arg0: i32, %arg1: i32) -> (i32, i32) {
    %c0_i32 = arith.constant 0 : i32
    %c0_i32_0 = arith.constant 0 : i32
    %c0_i32_1 = arith.constant 0 : i32
    return %c0_i32, %c0_i32_0 : i32, i32
  }
  func.func @transform_9(%arg0: i32, %arg1: i32) -> (i32, i32) {
    %c0_i32 = arith.constant 0 : i32
    %c0_i32_0 = arith.constant 0 : i32
    %c0_i32_1 = arith.constant 0 : i32
    return %c0_i32, %c0_i32_0 : i32, i32
  }
  func.func @transform_10(%arg0: i32, %arg1: i32) -> (i32, i32) {
    %c0_i32 = arith.constant 0 : i32
    %c0_i32_0 = arith.constant 0 : i32
    %c0_i32_1 = arith.constant 0 : i32
    return %c0_i32, %c0_i32_0 : i32, i32
  }
  func.func @transform_11(%arg0: i32, %arg1: i32) -> (i32, i32) {
    %c0_i32 = arith.constant 0 : i32
    %c0_i32_0 = arith.constant 0 : i32
    %c0_i32_1 = arith.constant 0 : i32
    return %c0_i32, %c0_i32_0 : i32, i32
  }
  func.func @transform_12(%arg0: i32, %arg1: i32) -> (i32, i32) {
    %c0_i32 = arith.constant 0 : i32
    %c0_i32_0 = arith.constant 0 : i32
    %c0_i32_1 = arith.constant 0 : i32
    return %c0_i32, %c0_i32_0 : i32, i32
  }
  func.func @transform_13(%arg0: i32, %arg1: i32) -> (i32, i32) {
    %c0_i32 = arith.constant 0 : i32
    %c0_i32_0 = arith.constant 0 : i32
    %c0_i32_1 = arith.constant 0 : i32
    return %c0_i32, %c0_i32_0 : i32, i32
  }
  func.func @transform_14(%arg0: i32, %arg1: i32) -> (i32, i32) {
    %c0_i32 = arith.constant 0 : i32
    %c0_i32_0 = arith.constant 0 : i32
    %c0_i32_1 = arith.constant 0 : i32
    return %c0_i32, %c0_i32_0 : i32, i32
  }
}

</mosaic_0001>

<llo_original>
// kernel: graphsage_forward.1
$region0: #{graphsage_forward.1}
  #allocation0 [shape = 'u32[]', space=smem, size = 0x4, offset = 0x4, fixed_abs, tag = 'smem constant byte address 0x4 - core index']
  #allocation1 [shape = 'u32[144,128]{1,0:T(1,128)}', space=vmem, size = 0x12000, scoped, tag = 'internal scratch']
  #allocation2 [shape = 'f32[2,32,128]{2,1,0:T(8,128)}', space=vmem, size = 0x8000, scoped, tag = 'scratch operand']
  %s0 = inlined_call_operand.vmem [shape: f32[32,128], index: 0, kind: input, shape index: {}]
  %s1 = inlined_call_operand.vmem [shape: bf16[32,32], index: 1, kind: input, shape index: {}]
  %s2 = inlined_call_operand.vmem [shape: f32[4,32,1], index: 2, kind: input, shape index: {}]
  %s3 = inlined_call_operand.vmem [shape: f32[4,128], index: 3, kind: input, shape index: {}]
  %s4 = inlined_call_operand.vmem [shape: f32[3,128,128], index: 4, kind: input, shape index: {}]
  %s5 = inlined_call_operand.vmem [shape: f32[3,1,128], index: 5, kind: input, shape index: {}]
  %s6 = inlined_call_operand.vmem [shape: f32[3,128,128], index: 6, kind: input, shape index: {}]
  %s7 = inlined_call_operand.vmem [shape: f32[128,128], index: 7, kind: input, shape index: {}]
  %s8 = inlined_call_operand.vmem [shape: f32[1,128], index: 8, kind: input, shape index: {}]
  %s9 = inlined_call_operand.vmem [shape: f32[128,128], index: 9, kind: input, shape index: {}]
  %s10 = inlined_call_operand.vmem [shape: f32[1,128], index: 10, kind: input, shape index: {}]
  %s11 = inlined_call_operand.vmem [shape: f32[128,128], index: 11, kind: input, shape index: {}]
  %s12 = inlined_call_operand.vmem [shape: f32[128,128], index: 12, kind: input, shape index: {}]
  %s13 = inlined_call_operand.vmem [shape: f32[1,128], index: 13, kind: input, shape index: {}]
  %s14 = inlined_call_operand.vmem [shape: f32[4,128], index: 14, kind: output, shape index: {}]
  %s15 = sld [smem:[#allocation0]]
  $region97: #{graphsage_forward.1} parent=0
    _
  %s17 = ssub.s32 1, %s15
  %s18 = scalar_select 0, %s17, %s15
  loop: start=0, step=1, limit=5
  $region2: #{graphsage_forward.1} parent=0 // loop_pre_header
    _
  $region3: #{graphsage_forward.1} parent=0 // loop_header
    %s20 = sphi 0, %s24
    %p21 = scmp.ge.s32.totalorder %s20, 5
    %s27 = sphi 0, %s39
    %s28 = sphi 0, %s35
    %s29 = sphi 0, %s27
    %s30 = sphi 0, %s28
    %s31 = sphi 0, %s29
    %s32 = sphi 0, %s30
    %s40 = sphi 0, %s40
    %s42 = sphi 0, %s40
    %s43 = sphi 0, %s42
    %s57 = sphi 0, %s43
    %s63 = sphi 0, %s65
    %s66 = sphi 0, %s63
    %s67 = sphi 0, %s66
    %s83 = sphi 0, %s67
    %s87 = sphi 0, %s87
    %s89 = sphi 0, %s87
    %s90 = sphi 0, %s89
    %s104 = sphi 0, %s90
    %s108 = sphi 0, %s108
    %s110 = sphi 0, %s108
    %s111 = sphi 0, %s110
    %s125 = sphi 0, %s111
    %s131 = sphi 0, %s133
    %s134 = sphi 0, %s131
    %s135 = sphi 0, %s134
    %s151 = sphi 0, %s135
    %s157 = sphi 0, %s159
    %s160 = sphi 0, %s157
    %s161 = sphi 0, %s160
    %s177 = sphi 0, %s161
    %s183 = sphi 0, %s185
    %s186 = sphi 0, %s183
    %s187 = sphi 0, %s186
    %s203 = sphi 0, %s187
    %s207 = sphi 0, %s207
    %s209 = sphi 0, %s207
    %s210 = sphi 0, %s209
    %s224 = sphi 0, %s210
    %s228 = sphi 0, %s228
    %s230 = sphi 0, %s228
    %s231 = sphi 0, %s230
    %s245 = sphi 0, %s231
    %s249 = sphi 0, %s249
    %s251 = sphi 0, %s249
    %s252 = sphi 0, %s251
    %s266 = sphi 0, %s252
    %s270 = sphi 0, %s270
    %s272 = sphi 0, %s270
    %s273 = sphi 0, %s272
    %s287 = sphi 0, %s273
    %s291 = sphi 0, %s291
    %s293 = sphi 0, %s291
    %s294 = sphi 0, %s293
    %s308 = sphi 0, %s294
    %s312 = sphi 0, %s312
    %s314 = sphi 0, %s312
    %s315 = sphi 0, %s314
    %s329 = sphi 0, %s315
    %s333 = sphi 0, %s333
    %s335 = sphi 0, %s333
    %s336 = sphi 0, %s335
    %s350 = sphi 0, %s336
    %s354 = sphi 0, %s354
    %s356 = sphi 0, %s354
    %s357 = sphi 0, %s356
    %s371 = sphi 0, %s357
  $region4: #{graphsage_forward.1} parent=0 // loop_header_branch
    %23 = sbr.rel (%p21) target = $region8
  $region5: #{graphsage_forward.1} parent=0 // loop_body
    %s25 = ssub.s32 %s20, 1
    %s26 = ssub.s32 %s20, 2
    %s33 = sadd.s32 1, %s28
    %p34 = scmp.ge.s32.totalorder %s33, 1
    %s35 = scalar_select %p34, 0, %s33
    %s36 = sadd.s32 1, %s27
    %s37 = scalar_select %p34, %s36, %s27
    %p38 = scmp.ge.s32.totalorder %s37, 3
    %s39 = scalar_select %p38, 0, %s37
    %s41 = sadd.s32 %s40, 1
    %p44 = scmp.eq.s32.totalorder %s20, 2
    %p45 = scmp.ne.s32.totalorder %s40, %s42
    %p46 = scmp.eq.s32.totalorder %s20, 0
    %p47 = por %p45, %p46
    %p48 = scmp.ne.s32.totalorder %s40, %s42
    %p49 = scmp.eq.s32.totalorder %s25, 2
    %p50 = por %p48, %p49
    %p51 = scmp.ne.s32.totalorder %s42, %s43
    %p52 = scmp.eq.s32.totalorder %s25, 0
    %p53 = por %p51, %p52
    %p54 = scmp.ne.s32.totalorder %s42, %s43
    %p55 = scmp.eq.s32.totalorder %s26, 2
    %p56 = por %p54, %p55
    %p58 = scmp.ne.s32.totalorder %s43, %s57
    %p59 = scmp.eq.s32.totalorder %s26, 0
    %p60 = por %p58, %p59
    %s61 = ssub.s32 %s28, %s35
    %p62 = scmp.eq.s32.totalorder %s61, 0
    %s64 = sadd.s32 %s63, 1
    %s65 = scalar_select %p62, %s63, %s64
    %p68 = pneg %p62
    %p69 = scmp.eq.s32.totalorder %s20, 2
    %p70 = por %p68, %p69
    %p71 = scmp.ne.s32.totalorder %s63, %s66
    %p72 = scmp.eq.s32.totalorder %s20, 0
    %p73 = por %p71, %p72
    %p74 = scmp.ne.s32.totalorder %s63, %s66
    %p75 = scmp.eq.s32.totalorder %s25, 2
    %p76 = por %p74, %p75
    %p77 = scmp.ne.s32.totalorder %s66, %s67
    %p78 = scmp.eq.s32.totalorder %s25, 0
    %p79 = por %p77, %p78
    %p80 = scmp.ne.s32.totalorder %s66, %s67
    %p81 = scmp.eq.s32.totalorder %s26, 2
    %p82 = por %p80, %p81
    %p84 = scmp.ne.s32.totalorder %s67, %s83
    %p85 = scmp.eq.s32.totalorder %s26, 0
    %p86 = por %p84, %p85
    %s88 = sadd.s32 %s87, 1
    %p91 = scmp.eq.s32.totalorder %s20, 2
    %p92 = scmp.ne.s32.totalorder %s87, %s89
    %p93 = scmp.eq.s32.totalorder %s20, 0
    %p94 = por %p92, %p93
    %p95 = scmp.ne.s32.totalorder %s87, %s89
    %p96 = scmp.eq.s32.totalorder %s25, 2
    %p97 = por %p95, %p96
    %p98 = scmp.ne.s32.totalorder %s89, %s90
    %p99 = scmp.eq.s32.totalorder %s25, 0
    %p100 = por %p98, %p99
    %p101 = scmp.ne.s32.totalorder %s89, %s90
    %p102 = scmp.eq.s32.totalorder %s26, 2
    %p103 = por %p101, %p102
    %p105 = scmp.ne.s32.totalorder %s90, %s104
    %p106 = scmp.eq.s32.totalorder %s26, 0
    %p107 = por %p105, %p106
    %s109 = sadd.s32 %s108, 1
    %p112 = scmp.eq.s32.totalorder %s20, 2
    %p113 = scmp.ne.s32.totalorder %s108, %s110
    %p114 = scmp.eq.s32.totalorder %s20, 0
    %p115 = por %p113, %p114
    %p116 = scmp.ne.s32.totalorder %s108, %s110
    %p117 = scmp.eq.s32.totalorder %s25, 2
    %p118 = por %p116, %p117
    %p119 = scmp.ne.s32.totalorder %s110, %s111
    %p120 = scmp.eq.s32.totalorder %s25, 0
    %p121 = por %p119, %p120
    %p122 = scmp.ne.s32.totalorder %s110, %s111
    %p123 = scmp.eq.s32.totalorder %s26, 2
    %p124 = por %p122, %p123
    %p126 = scmp.ne.s32.totalorder %s111, %s125
    %p127 = scmp.eq.s32.totalorder %s26, 0
    %p128 = por %p126, %p127
    %s129 = ssub.s32 %s27, %s39
    %p130 = scmp.eq.s32.totalorder %s129, 0
    %s132 = sadd.s32 %s131, 1
    %s133 = scalar_select %p130, %s131, %s132
    %p136 = pneg %p130
    %p137 = scmp.eq.s32.totalorder %s20, 2
    %p138 = por %p136, %p137
    %p139 = scmp.ne.s32.totalorder %s131, %s134
    %p140 = scmp.eq.s32.totalorder %s20, 0
    %p141 = por %p139, %p140
    %p142 = scmp.ne.s32.totalorder %s131, %s134
    %p143 = scmp.eq.s32.totalorder %s25, 2
    %p144 = por %p142, %p143
    %p145 = scmp.ne.s32.totalorder %s134, %s135
    %p146 = scmp.eq.s32.totalorder %s25, 0
    %p147 = por %p145, %p146
    %p148 = scmp.ne.s32.totalorder %s134, %s135
    %p149 = scmp.eq.s32.totalorder %s26, 2
    %p150 = por %p148, %p149
    %p152 = scmp.ne.s32.totalorder %s135, %s151
    %p153 = scmp.eq.s32.totalorder %s26, 0
    %p154 = por %p152, %p153
    %s155 = ssub.s32 %s27, %s39
    %p156 = scmp.eq.s32.totalorder %s155, 0
    %s158 = sadd.s32 %s157, 1
    %s159 = scalar_select %p156, %s157, %s158
    %p162 = pneg %p156
    %p163 = scmp.eq.s32.totalorder %s20, 2
    %p164 = por %p162, %p163
    %p165 = scmp.ne.s32.totalorder %s157, %s160
    %p166 = scmp.eq.s32.totalorder %s20, 0
    %p167 = por %p165, %p166
    %p168 = scmp.ne.s32.totalorder %s157, %s160
    %p169 = scmp.eq.s32.totalorder %s25, 2
    %p170 = por %p168, %p169
    %p171 = scmp.ne.s32.totalorder %s160, %s161
    %p172 = scmp.eq.s32.totalorder %s25, 0
    %p173 = por %p171, %p172
    %p174 = scmp.ne.s32.totalorder %s160, %s161
    %p175 = scmp.eq.s32.totalorder %s26, 2
    %p176 = por %p174, %p175
    %p178 = scmp.ne.s32.totalorder %s161, %s177
    %p179 = scmp.eq.s32.totalorder %s26, 0
    %p180 = por %p178, %p179
    %s181 = ssub.s32 %s27, %s39
    %p182 = scmp.eq.s32.totalorder %s181, 0
    %s184 = sadd.s32 %s183, 1
    %s185 = scalar_select %p182, %s183, %s184
    %p188 = pneg %p182
    %p189 = scmp.eq.s32.totalorder %s20, 2
    %p190 = por %p188, %p189
    %p191 = scmp.ne.s32.totalorder %s183, %s186
    %p192 = scmp.eq.s32.totalorder %s20, 0
    %p193 = por %p191, %p192
    %p194 = scmp.ne.s32.totalorder %s183, %s186
    %p195 = scmp.eq.s32.totalorder %s25, 2
    %p196 = por %p194, %p195
    %p197 = scmp.ne.s32.totalorder %s186, %s187
    %p198 = scmp.eq.s32.totalorder %s25, 0
    %p199 = por %p197, %p198
    %p200 = scmp.ne.s32.totalorder %s186, %s187
    %p201 = scmp.eq.s32.totalorder %s26, 2
    %p202 = por %p200, %p201
    %p204 = scmp.ne.s32.totalorder %s187, %s203
    %p205 = scmp.eq.s32.totalorder %s26, 0
    %p206 = por %p204, %p205
    %s208 = sadd.s32 %s207, 1
    %p211 = scmp.eq.s32.totalorder %s20, 2
    %p212 = scmp.ne.s32.totalorder %s207, %s209
    %p213 = scmp.eq.s32.totalorder %s20, 0
    %p214 = por %p212, %p213
    %p215 = scmp.ne.s32.totalorder %s207, %s209
    %p216 = scmp.eq.s32.totalorder %s25, 2
    %p217 = por %p215, %p216
    %p218 = scmp.ne.s32.totalorder %s209, %s210
    %p219 = scmp.eq.s32.totalorder %s25, 0
    %p220 = por %p218, %p219
    %p221 = scmp.ne.s32.totalorder %s209, %s210
    %p222 = scmp.eq.s32.totalorder %s26, 2
    %p223 = por %p221, %p222
    %p225 = scmp.ne.s32.totalorder %s210, %s224
    %p226 = scmp.eq.s32.totalorder %s26, 0
    %p227 = por %p225, %p226
    %s229 = sadd.s32 %s228, 1
    %p232 = scmp.eq.s32.totalorder %s20, 2
    %p233 = scmp.ne.s32.totalorder %s228, %s230
    %p234 = scmp.eq.s32.totalorder %s20, 0
    %p235 = por %p233, %p234
    %p236 = scmp.ne.s32.totalorder %s228, %s230
    %p237 = scmp.eq.s32.totalorder %s25, 2
    %p238 = por %p236, %p237
    %p239 = scmp.ne.s32.totalorder %s230, %s231
    %p240 = scmp.eq.s32.totalorder %s25, 0
    %p241 = por %p239, %p240
    %p242 = scmp.ne.s32.totalorder %s230, %s231
    %p243 = scmp.eq.s32.totalorder %s26, 2
    %p244 = por %p242, %p243
    %p246 = scmp.ne.s32.totalorder %s231, %s245
    %p247 = scmp.eq.s32.totalorder %s26, 0
    %p248 = por %p246, %p247
    %s250 = sadd.s32 %s249, 1
    %p253 = scmp.eq.s32.totalorder %s20, 2
    %p254 = scmp.ne.s32.totalorder %s249, %s251
    %p255 = scmp.eq.s32.totalorder %s20, 0
    %p256 = por %p254, %p255
    %p257 = scmp.ne.s32.totalorder %s249, %s251
    %p258 = scmp.eq.s32.totalorder %s25, 2
    %p259 = por %p257, %p258
    %p260 = scmp.ne.s32.totalorder %s251, %s252
    %p261 = scmp.eq.s32.totalorder %s25, 0
    %p262 = por %p260, %p261
    %p263 = scmp.ne.s32.totalorder %s251, %s252
    %p264 = scmp.eq.s32.totalorder %s26, 2
    %p265 = por %p263, %p264
    %p267 = scmp.ne.s32.totalorder %s252, %s266
    %p268 = scmp.eq.s32.totalorder %s26, 0
    %p269 = por %p267, %p268
    %s271 = sadd.s32 %s270, 1
    %p274 = scmp.eq.s32.totalorder %s20, 2
    %p275 = scmp.ne.s32.totalorder %s270, %s272
    %p276 = scmp.eq.s32.totalorder %s20, 0
    %p277 = por %p275, %p276
    %p278 = scmp.ne.s32.totalorder %s270, %s272
    %p279 = scmp.eq.s32.totalorder %s25, 2
    %p280 = por %p278, %p279
    %p281 = scmp.ne.s32.totalorder %s272, %s273
    %p282 = scmp.eq.s32.totalorder %s25, 0
    %p283 = por %p281, %p282
    %p284 = scmp.ne.s32.totalorder %s272, %s273
    %p285 = scmp.eq.s32.totalorder %s26, 2
    %p286 = por %p284, %p285
    %p288 = scmp.ne.s32.totalorder %s273, %s287
    %p289 = scmp.eq.s32.totalorder %s26, 0
    %p290 = por %p288, %p289
    %s292 = sadd.s32 %s291, 1
    %p295 = scmp.eq.s32.totalorder %s20, 2
    %p296 = scmp.ne.s32.totalorder %s291, %s293
    %p297 = scmp.eq.s32.totalorder %s20, 0
    %p298 = por %p296, %p297
    %p299 = scmp.ne.s32.totalorder %s291, %s293
    %p300 = scmp.eq.s32.totalorder %s25, 2
    %p301 = por %p299, %p300
    %p302 = scmp.ne.s32.totalorder %s293, %s294
    %p303 = scmp.eq.s32.totalorder %s25, 0
    %p304 = por %p302, %p303
    %p305 = scmp.ne.s32.totalorder %s293, %s294
    %p306 = scmp.eq.s32.totalorder %s26, 2
    %p307 = por %p305, %p306
    %p309 = scmp.ne.s32.totalorder %s294, %s308
    %p310 = scmp.eq.s32.totalorder %s26, 0
    %p311 = por %p309, %p310
    %s313 = sadd.s32 %s312, 1
    %p316 = scmp.eq.s32.totalorder %s20, 2
    %p317 = scmp.ne.s32.totalorder %s312, %s314
    %p318 = scmp.eq.s32.totalorder %s20, 0
    %p319 = por %p317, %p318
    %p320 = scmp.ne.s32.totalorder %s312, %s314
    %p321 = scmp.eq.s32.totalorder %s25, 2
    %p322 = por %p320, %p321
    %p323 = scmp.ne.s32.totalorder %s314, %s315
    %p324 = scmp.eq.s32.totalorder %s25, 0
    %p325 = por %p323, %p324
    %p326 = scmp.ne.s32.totalorder %s314, %s315
    %p327 = scmp.eq.s32.totalorder %s26, 2
    %p328 = por %p326, %p327
    %p330 = scmp.ne.s32.totalorder %s315, %s329
    %p331 = scmp.eq.s32.totalorder %s26, 0
    %p332 = por %p330, %p331
    %s334 = sadd.s32 %s333, 1
    %p337 = scmp.eq.s32.totalorder %s20, 2
    %p338 = scmp.ne.s32.totalorder %s333, %s335
    %p339 = scmp.eq.s32.totalorder %s20, 0
    %p340 = por %p338, %p339
    %p341 = scmp.ne.s32.totalorder %s333, %s335
    %p342 = scmp.eq.s32.totalorder %s25, 2
    %p343 = por %p341, %p342
    %p344 = scmp.ne.s32.totalorder %s335, %s336
    %p345 = scmp.eq.s32.totalorder %s25, 0
    %p346 = por %p344, %p345
    %p347 = scmp.ne.s32.totalorder %s335, %s336
    %p348 = scmp.eq.s32.totalorder %s26, 2
    %p349 = por %p347, %p348
    %p351 = scmp.ne.s32.totalorder %s336, %s350
    %p352 = scmp.eq.s32.totalorder %s26, 0
    %p353 = por %p351, %p352
    %s355 = sadd.s32 %s354, 1
    %p358 = scmp.eq.s32.totalorder %s20, 2
    %p359 = scmp.ne.s32.totalorder %s354, %s356
    %p360 = scmp.eq.s32.totalorder %s20, 0
    %p361 = por %p359, %p360
    %p362 = scmp.ne.s32.totalorder %s354, %s356
    %p363 = scmp.eq.s32.totalorder %s25, 2
    %p364 = por %p362, %p363
    %p365 = scmp.ne.s32.totalorder %s356, %s357
    %p366 = scmp.eq.s32.totalorder %s25, 0
    %p367 = por %p365, %p366
    %p368 = scmp.ne.s32.totalorder %s356, %s357
    %p369 = scmp.eq.s32.totalorder %s26, 2
    %p370 = por %p368, %p369
    %p372 = scmp.ne.s32.totalorder %s357, %s371
    %p373 = scmp.eq.s32.totalorder %s26, 0
    %p374 = por %p372, %p373
    %p375 = scmp.le.s32.totalorder 1, %s20
    %p376 = scmp.lt.s32.totalorder %s20, 4
    %p377 = pnand %p375, %p376
    %p378 = pneg %p377
    // Predicated region
    $region9: #{graphsage_forward.1} parent=5 // pred_check
      _
    $region10: #{graphsage_forward.1} parent=5 // pred_check_branch
      %380 = sbr.rel (%p377) target = $region12
    $region11: #{graphsage_forward.1} parent=5 // pred_region
      %s381 = ssub.s32 %s20, 1
      // Predicated region
      $region13: #{graphsage_forward.1} parent=11 // pred_check
        %p382 = pneg %p53
      $region14: #{graphsage_forward.1} parent=11 // pred_check_branch
        %384 = sbr.rel (%p382) target = $region16
      $region15: #{graphsage_forward.1} parent=11 // pred_region
        _
      $region16: #{graphsage_forward.1} parent=11 // pred_fallthru
        _
      // Predicated region
      $region17: #{graphsage_forward.1} parent=11 // pred_check
        %p385 = pneg %p79
      $region18: #{graphsage_forward.1} parent=11 // pred_check_branch
        %387 = sbr.rel (%p385) target = $region20
      $region19: #{graphsage_forward.1} parent=11 // pred_region
        %s388 = smul.u32 4, %s30
        %p389 = scmp.lt.s32.totalorder %s388, 3
        %s390 = scalar_select %p389, %s388, 3
        %s391 = smul.addr %s390, 4
        %s392 = scalar_lea.vmem %s1, %s391
        %s393 = smul.u32 4, %s30
      $region20: #{graphsage_forward.1} parent=11 // pred_fallthru
        _
      // Predicated region
      $region21: #{graphsage_forward.1} parent=11 // pred_check
        %p394 = pneg %p100
      $region22: #{graphsage_forward.1} parent=11 // pred_check_branch
        %396 = sbr.rel (%p394) target = $region24
      $region23: #{graphsage_forward.1} parent=11 // pred_region
        _
      $region24: #{graphsage_forward.1} parent=11 // pred_fallthru
        _
      // Predicated region
      $region25: #{graphsage_forward.1} parent=11 // pred_check
        %p397 = pneg %p121
      $region26: #{graphsage_forward.1} parent=11 // pred_check_branch
        %399 = sbr.rel (%p397) target = $region28
      $region27: #{graphsage_forward.1} parent=11 // pred_region
        _
      $region28: #{graphsage_forward.1} parent=11 // pred_fallthru
        _
      // Predicated region
      $region29: #{graphsage_forward.1} parent=11 // pred_check
        %p400 = pneg %p220
      $region30: #{graphsage_forward.1} parent=11 // pred_check_branch
        %402 = sbr.rel (%p400) target = $region32
      $region31: #{graphsage_forward.1} parent=11 // pred_region
        _
      $region32: #{graphsage_forward.1} parent=11 // pred_fallthru
        _
      // Predicated region
      $region33: #{graphsage_forward.1} parent=11 // pred_check
        %p403 = pneg %p241
      $region34: #{graphsage_forward.1} parent=11 // pred_check_branch
        %405 = sbr.rel (%p403) target = $region36
      $region35: #{graphsage_forward.1} parent=11 // pred_region
        _
      $region36: #{graphsage_forward.1} parent=11 // pred_fallthru
        _
      // Predicated region
      $region37: #{graphsage_forward.1} parent=11 // pred_check
        %p406 = pneg %p262
      $region38: #{graphsage_forward.1} parent=11 // pred_check_branch
        %408 = sbr.rel (%p406) target = $region40
      $region39: #{graphsage_forward.1} parent=11 // pred_region
        _
      $region40: #{graphsage_forward.1} parent=11 // pred_fallthru
        _
      // Predicated region
      $region41: #{graphsage_forward.1} parent=11 // pred_check
        %p409 = pneg %p283
      $region42: #{graphsage_forward.1} parent=11 // pred_check_branch
        %411 = sbr.rel (%p409) target = $region44
      $region43: #{graphsage_forward.1} parent=11 // pred_region
        _
      $region44: #{graphsage_forward.1} parent=11 // pred_fallthru
        _
      // Predicated region
      $region45: #{graphsage_forward.1} parent=11 // pred_check
        %p412 = pneg %p304
      $region46: #{graphsage_forward.1} parent=11 // pred_check_branch
        %414 = sbr.rel (%p412) target = $region48
      $region47: #{graphsage_forward.1} parent=11 // pred_region
        _
      $region48: #{graphsage_forward.1} parent=11 // pred_fallthru
        _
      // Predicated region
      $region49: #{graphsage_forward.1} parent=11 // pred_check
        %p415 = pneg %p325
      $region50: #{graphsage_forward.1} parent=11 // pred_check_branch
        %417 = sbr.rel (%p415) target = $region52
      $region51: #{graphsage_forward.1} parent=11 // pred_region
        _
      $region52: #{graphsage_forward.1} parent=11 // pred_fallthru
        _
      // Predicated region
      $region53: #{graphsage_forward.1} parent=11 // pred_check
        %p418 = pneg %p346
      $region54: #{graphsage_forward.1} parent=11 // pred_check_branch
        %420 = sbr.rel (%p418) target = $region56
      $region55: #{graphsage_forward.1} parent=11 // pred_region
        _
      $region56: #{graphsage_forward.1} parent=11 // pred_fallthru
        _
    $region12: #{graphsage_forward.1} parent=5 // pred_fallthru
      _
    %p421 = scmp.lt.s32.totalorder %s20, 3
    // Predicated region
    $region57: #{graphsage_forward.1} parent=5 // pred_check
      %p422 = pneg %p421
    $region58: #{graphsage_forward.1} parent=5 // pred_check_branch
      %424 = sbr.rel (%p422) target = $region60
    $region59: #{graphsage_forward.1} parent=5 // pred_region
      // Predicated region
      $region61: #{graphsage_forward.1} parent=59 // pred_check
        %p425 = pneg %p141
      $region62: #{graphsage_forward.1} parent=59 // pred_check_branch
        %427 = sbr.rel (%p425) target = $region64
      $region63: #{graphsage_forward.1} parent=59 // pred_region
        %p428 = scmp.lt.s32.totalorder %s27, 2
        %s429 = scalar_select %p428, %s27, 2
        %s430 = smul.addr %s429, 16
        %s431 = smul.addr %s430, 8
        %s432 = scalar_lea.vmem %s4, %s431
      $region64: #{graphsage_forward.1} parent=59 // pred_fallthru
        _
      // Predicated region
      $region65: #{graphsage_forward.1} parent=59 // pred_check
        %p433 = pneg %p167
      $region66: #{graphsage_forward.1} parent=59 // pred_check_branch
        %435 = sbr.rel (%p433) target = $region68
      $region67: #{graphsage_forward.1} parent=59 // pred_region
        %p436 = scmp.lt.s32.totalorder %s27, 2
        %s437 = scalar_select %p436, %s27, 2
        %s438 = scalar_lea.vmem %s5, %s437
      $region68: #{graphsage_forward.1} parent=59 // pred_fallthru
        _
      // Predicated region
      $region69: #{graphsage_forward.1} parent=59 // pred_check
        %p439 = pneg %p193
      $region70: #{graphsage_forward.1} parent=59 // pred_check_branch
        %441 = sbr.rel (%p439) target = $region72
      $region71: #{graphsage_forward.1} parent=59 // pred_region
        %p442 = scmp.lt.s32.totalorder %s27, 2
        %s443 = scalar_select %p442, %s27, 2
        %s444 = smul.addr %s443, 16
        %s445 = smul.addr %s444, 8
        %s446 = scalar_lea.vmem %s6, %s445
      $region72: #{graphsage_forward.1} parent=59 // pred_fallthru
        _
    $region60: #{graphsage_forward.1} parent=5 // pred_fallthru
      _
    %p447 = scmp.le.s32.totalorder 1, %s20
    %p448 = scmp.lt.s32.totalorder %s20, 4
    %p449 = pnand %p447, %p448
    %p450 = pneg %p449
    // Predicated region
    $region73: #{graphsage_forward.1} parent=5 // pred_check
      _
    $region74: #{graphsage_forward.1} parent=5 // pred_check_branch
      %452 = sbr.rel (%p449) target = $region76
    $region75: #{graphsage_forward.1} parent=5 // pred_region
      %s453 = ssub.s32 %s20, 1
      %p454 = pneg %p53
      %p455 = pneg %p50
      %s456 = smul.u32 4, %s30
      %p457 = scmp.lt.s32.totalorder %s456, 3
      %s458 = scalar_select %p457, %s456, 3
      %s459 = smul.addr %s458, 4
      %s460 = scalar_lea.vmem %s1, %s459
      %p461 = pneg %p79
      %p462 = pneg %p76
      %p463 = pneg %p100
      %p464 = pneg %p97
      %p465 = pneg %p121
      %p466 = pneg %p118
      %p467 = scmp.lt.s32.totalorder %s29, 2
      %s468 = scalar_select %p467, %s29, 2
      %s469 = smul.addr %s468, 16
      %s470 = smul.addr %s469, 8
      %s471 = scalar_lea.vmem %s4, %s470
      %p472 = pneg %p147
      %p473 = pneg %p144
      %p474 = scmp.lt.s32.totalorder %s29, 2
      %s475 = scalar_select %p474, %s29, 2
      %s476 = scalar_lea.vmem %s5, %s475
      %p477 = pneg %p173
      %p478 = pneg %p170
      %p479 = scmp.lt.s32.totalorder %s29, 2
      %s480 = scalar_select %p479, %s29, 2
      %s481 = smul.addr %s480, 16
      %s482 = smul.addr %s481, 8
      %s483 = scalar_lea.vmem %s6, %s482
      %p484 = pneg %p199
      %p485 = pneg %p196
      %p486 = pneg %p220
      %p487 = pneg %p217
      %p488 = pneg %p241
      %p489 = pneg %p238
      %p490 = pneg %p262
      %p491 = pneg %p259
      %p492 = pneg %p283
      %p493 = pneg %p280
      %p494 = pneg %p304
      %p495 = pneg %p301
      %p496 = pneg %p325
      %p497 = pneg %p322
      %p498 = pneg %p346
      %p499 = pneg %p343
      %p500 = pneg %p367
      %p501 = pneg %p364
      %s502 = smul.u32 4, %s30
      %p503 = scmp.lt.s32.totalorder %s502, 3
      %s504 = scalar_select %p503, %s502, 3
      %s505 = smul.addr %s504, 4
      %s506 = scalar_lea.vmem %s1, %s505
      %s507 = smul.u32 4, %s30
      %p508 = scmp.lt.s32.totalorder %s29, 2
      %s509 = scalar_select %p508, %s29, 2
      %s510 = smul.addr %s509, 16
      %s511 = smul.addr %s510, 8
      %s512 = scalar_lea.vmem %s4, %s511
      %p513 = scmp.lt.s32.totalorder %s29, 2
      %s514 = scalar_select %p513, %s29, 2
      %s515 = scalar_lea.vmem %s5, %s514
      %p516 = scmp.lt.s32.totalorder %s29, 2
      %s517 = scalar_select %p516, %s29, 2
      %s518 = smul.addr %s517, 16
      %s519 = smul.addr %s518, 8
      %s520 = scalar_lea.vmem %s6, %s519
      %p522 = scmp.eq.s32.totalorder %s29, 0
      %p523 = scmp.eq.s32.totalorder %s30, 0
      %p524 = pnand %p522, %p523
      %p525 = pneg %p524
      // Predicated region
      $region77: #{graphsage_forward.1} parent=75 // pred_check
        _
      $region78: #{graphsage_forward.1} parent=75 // pred_check_branch
        %527 = sbr.rel (%p524) target = $region80
      $region79: #{graphsage_forward.1} parent=75 // pred_region
        %v528 = vld [vmem:[%s0] sm:$0xff]
        %v529 = vld [vmem:[%s0 + $0x8] sm:$0xff]
        %v530 = vld [vmem:[%s0 + $0x10] sm:$0xff]
        %v531 = vld [vmem:[%s0 + $0x18] sm:$0xff]
        %532 = vst [vmem:[#allocation2] sm:$0xff] %v528
        %533 = vst [vmem:[#allocation2 + $0x8] sm:$0xff] %v529
        %534 = vst [vmem:[#allocation2 + $0x10] sm:$0xff] %v530
        %535 = vst [vmem:[#allocation2 + $0x18] sm:$0xff] %v531
      $region80: #{graphsage_forward.1} parent=75 // pred_fallthru
        _
      %p536 = scmp.lt.s32.totalorder %s29, 0
      %s537 = ssub.s32 0, %s29
      %s538 = scalar_select %p536, %s537, %s29
      %s539 = sand.u32 %s538, 1
      %s540 = ssub.s32 0, %s539
      %s541 = scalar_select %p536, %s540, %s539
      %p542 = scmp.ne.s32.totalorder %s541, 0
      %p543 = scmp.lt.s32.totalorder %s541, 0
      %p544 = pnand %p543, %p542
      %p545 = pneg %p544
      %s546 = sadd.s32 %s541, 2
      %s547 = scalar_select %p545, %s546, %s541
      %s548 = sadd.s32 %s29, 1
      %p549 = scmp.lt.s32.totalorder %s548, 0
      %s550 = ssub.s32 0, %s548
      %s551 = scalar_select %p549, %s550, %s548
      %s552 = sand.u32 %s551, 1
      %s553 = ssub.s32 0, %s552
      %s554 = scalar_select %p549, %s553, %s552
      %p555 = scmp.ne.s32.totalorder %s554, 0
      %p556 = scmp.lt.s32.totalorder %s554, 0
      %p557 = pnand %p556, %p555
      %p558 = pneg %p557
      %s559 = sadd.s32 %s554, 2
      %s560 = scalar_select %p558, %s559, %s554
      %s561 = smul.u32 %s30, 32
      %s562 = smul.u32 %s547, 32
      %s563 = scalar_lea.vmem [#allocation2], %s562
      %v564 = vld [vmem:[%s563] sm:$0xff]
      %v565 = vld [vmem:[%s563 + $0x8] sm:$0xff]
      %v566 = vld [vmem:[%s563 + $0x10] sm:$0xff]
      %v567 = vld [vmem:[%s563 + $0x18] sm:$0xff]
      %s568 = scalar_lea.vmem %s563, %s561 [#allocation2]
      %v569 = vld [vmem:[%s568] sm:$0xff]
      %v570 = vld [vmem:[%s568 + $0x8] sm:$0xff]
      %v571 = vld [vmem:[%s568 + $0x10] sm:$0xff]
      %v572 = vld [vmem:[%s568 + $0x18] sm:$0xff]
      %v573 = vld [vmem:[%s506] sm:$0xf]
      %v574 = vld [vmem:[%s506 + $0x4] sm:$0xf]
      %v575 = vld [vmem:[%s506 + $0x8] sm:$0xf]
      %v576 = vld [vmem:[%s506 + $0xc] sm:$0xf]
      %v577 = vunpack.c.l.bf16 %v573
      %v578 = vunpack.c.l.bf16 %v574
      %v579 = vunpack.c.l.bf16 %v575
      %v580 = vunpack.c.l.bf16 %v576
      %vm581 = vcmask 261120
      %v582 = vsel %vm581, %v577, 0.0
      %583 = vadd.xlane.f32.xlu0 %v582
      %v584 = vpop.xlane.xlu0 %583
      %v585 = vsel %vm581, %v578, 0.0
      %586 = vadd.xlane.f32.xlu0 %v585
      %v587 = vpop.xlane.xlu0 %586
      %v588 = vsel %vm581, %v579, 0.0
      %589 = vadd.xlane.f32.xlu0 %v588
      %v590 = vpop.xlane.xlu0 %589
      %v591 = vsel %vm581, %v580, 0.0
      %592 = vadd.xlane.f32.xlu0 %v591
      %v593 = vpop.xlane.xlu0 %592
      %vm594 = vcmp.gt.f32.partialorder %v584, 0.0
      %vm595 = vcmp.gt.f32.partialorder %v587, 0.0
      %vm596 = vcmp.gt.f32.partialorder %v590, 0.0
      %vm597 = vcmp.gt.f32.partialorder %v593, 0.0
      %v598 = vrcp.pop %v584
      %v599 = vmul.f32 1.0, %v598
      %v600 = vrcp.pop %v587
      %v601 = vmul.f32 1.0, %v600
      %v602 = vrcp.pop %v590
      %v603 = vmul.f32 1.0, %v602
      %v604 = vrcp.pop %v593
      %v605 = vmul.f32 1.0, %v604
      %v606 = vsel %vm594, %v599, 0.0
      %v607 = vsel %vm595, %v601, 0.0
      %v608 = vsel %vm596, %v603, 0.0
      %v609 = vsel %vm597, %v605, 0.0
      %v610 = vpack.c.bf16 %v565, %v564
      %v611 = vpack.c.bf16 %v567, %v566
      %v616 = vunpack.c.l.b16 %v573
      %v617 = vunpack.c.l.b16 %v574
      %v618 = vunpack.c.l.b16 %v575
      %v619 = vunpack.c.l.b16 %v576
      %v620 = vpack.c.b16 %v617, %v616
      %v621 = vpack.c.b16 %v619, %v618
      %v623 = vsel %vm581, %v620, 0
      %v626 = vsel %vm581, %v621, 0
      %628 = vmatprep.subr.bf16.mxu0 0
      %629 = vmatpush1.bf16.msra.mxu0 0
      %630 = vmatprep.subr.bf16.mxu0 0
      %631 = vmatpush1.bf16.msra.mxu0 0
      %632 = vmatprep.subr.bf16.mxu0 0
      %633 = vmatpush1.bf16.msra.mxu0 0
      %634 = vmatprep.subr.bf16.mxu0 0
      %635 = vmatpush1.bf16.msra.mxu0 0
      %636 = vmatprep.subr.bf16.mxu0 0
      %637 = vmatpush1.bf16.msra.mxu0 0
      %638 = vmatprep.subr.bf16.mxu0 0
      %639 = vmatpush1.bf16.msra.mxu0 0
      %640 = vmatprep.subr.bf16.mxu0 0
      %641 = vmatpush1.bf16.msra.mxu0 %v611
      %642 = vmatprep.subr.bf16.mxu0 0
      %643 = vmatpush1.bf16.msra.mxu0 %v610
      %644 = vmatprep.subr.bf16.mxu0 0
      %645 = vmatpush2.bf16.msra.mxu0 0
      %646 = vmatprep.subr.bf16.mxu0 0
      %647 = vmatpush2.bf16.msra.mxu0 0
      %648 = vmatprep.subr.bf16.mxu0 0
      %649 = vmatpush2.bf16.msra.mxu0 0
      %650 = vmatprep.subr.bf16.mxu0 0
      %651 = vmatpush2.bf16.msra.mxu0 0
      %652 = vmatprep.subr.bf16.mxu0 0
      %653 = vmatpush2.bf16.msra.mxu0 0
      %654 = vmatprep.subr.bf16.mxu0 0
      %655 = vmatpush2.bf16.msra.mxu0 0
      %656 = vmatprep.subr.bf16.mxu0 0
      %657 = vmatpush2.bf16.msra.mxu0 0
      %658 = vmatprep.subr.bf16.mxu0 0
      %659 = vmatpush2.bf16.msra.mxu0 0
      %660 = vmatprep.mubr.bf16.mxu0 0
      %661 = vmatmul.mubr.bf16.gmra.mxu0 %v623
      %v662 = vpop.f32.mrf.mxu0
      %v663 = vadd.f32 0.0, %v662
      %v664 = vpop.f32.mrf.mxu0
      %v665 = vpop.f32.mrf.mxu0
      %v666 = vadd.f32 0.0, %v665
      %v667 = vpop.f32.mrf.mxu0
      %668 = vmatprep.mubr.bf16.mxu0 0
      %669 = vmatmul.mubr.bf16.gmra.mxu0 %v626
      %v670 = vpop.f32.mrf.mxu0
      %v671 = vadd.f32 0.0, %v670
      %v672 = vpop.f32.mrf.mxu0
      %v673 = vpop.f32.mrf.mxu0
      %v674 = vadd.f32 0.0, %v673
      %v675 = vpop.f32.mrf.mxu0
      %676 = vdwg.mxu0
      %v677 = vmul.f32 %v663, %v606
      %v678 = vmul.f32 %v666, %v607
      %v679 = vmul.f32 %v671, %v608
      %v680 = vmul.f32 %v674, %v609
      %v681 = vld [vmem:[%s512] sm:$0xff]
      %v682 = vld [vmem:[%s512 + $0x8] sm:$0xff]
      %v683 = vld [vmem:[%s512 + $0x10] sm:$0xff]
      %v684 = vld [vmem:[%s512 + $0x18] sm:$0xff]
      %v685 = vld [vmem:[%s512 + $0x20] sm:$0xff]
      %v686 = vld [vmem:[%s512 + $0x28] sm:$0xff]
      %v687 = vld [vmem:[%s512 + $0x30] sm:$0xff]
      %v688 = vld [vmem:[%s512 + $0x38] sm:$0xff]
      %v689 = vld [vmem:[%s512 + $0x40] sm:$0xff]
      %v690 = vld [vmem:[%s512 + $0x48] sm:$0xff]
      %v691 = vld [vmem:[%s512 + $0x50] sm:$0xff]
      %v692 = vld [vmem:[%s512 + $0x58] sm:$0xff]
      %v693 = vld [vmem:[%s512 + $0x60] sm:$0xff]
      %v694 = vld [vmem:[%s512 + $0x68] sm:$0xff]
      %v695 = vld [vmem:[%s512 + $0x70] sm:$0xff]
      %v696 = vld [vmem:[%s512 + $0x78] sm:$0xff]
      %v697 = vld [vmem:[%s515] sm:$0x1]
      %v699 = vlaneseq
      %v700 = vshrl.u32 %v699, 7
      %v701 = vsub.s32 0, %v700
      %v702 = vrot.slane %v697, %v701
      %704 = vmatprep.subr.mxu0 0.0
      %705 = vmatpush1.msra.mxu0 %v696
      %706 = vmatprep.subr.mxu0 0.0
      %707 = vmatpush1.msra.mxu0 %v695
      %708 = vmatprep.subr.mxu0 0.0
      %709 = vmatpush1.msra.mxu0 %v694
      %710 = vmatprep.subr.mxu0 0.0
      %711 = vmatpush1.msra.mxu0 %v693
      %712 = vmatprep.subr.mxu0 0.0
      %713 = vmatpush1.msra.mxu0 %v692
      %714 = vmatprep.subr.mxu0 0.0
      %715 = vmatpush1.msra.mxu0 %v691
      %716 = vmatprep.subr.mxu0 0.0
      %717 = vmatpush1.msra.mxu0 %v690
      %718 = vmatprep.subr.mxu0 0.0
      %719 = vmatpush1.msra.mxu0 %v689
      %720 = vmatprep.subr.mxu0 0.0
      %721 = vmatpush1.msra.mxu0 %v688
      %722 = vmatprep.subr.mxu0 0.0
      %723 = vmatpush1.msra.mxu0 %v687
      %724 = vmatprep.subr.mxu0 0.0
      %725 = vmatpush1.msra.mxu0 %v686
      %726 = vmatprep.subr.mxu0 0.0
      %727 = vmatpush1.msra.mxu0 %v685
      %728 = vmatprep.subr.mxu0 0.0
      %729 = vmatpush1.msra.mxu0 %v684
      %730 = vmatprep.subr.mxu0 0.0
      %731 = vmatpush1.msra.mxu0 %v683
      %732 = vmatprep.subr.mxu0 0.0
      %733 = vmatpush1.msra.mxu0 %v682
      %734 = vmatprep.subr.mxu0 0.0
      %735 = vmatpush1.msra.mxu0 %v681
      %736 = vmatprep.subr.mxu0 0.0
      %737 = vmatpush2.msra.mxu0 0.0
      %738 = vmatprep.subr.mxu0 0.0
      %739 = vmatpush2.msra.mxu0 0.0
      %740 = vmatprep.subr.mxu0 0.0
      %741 = vmatpush2.msra.mxu0 0.0
      %742 = vmatprep.subr.mxu0 0.0
      %743 = vmatpush2.msra.mxu0 0.0
      %744 = vmatprep.subr.mxu0 0.0
      %745 = vmatpush2.msra.mxu0 0.0
      %746 = vmatprep.subr.mxu0 0.0
      %747 = vmatpush2.msra.mxu0 0.0
      %748 = vmatprep.subr.mxu0 0.0
      %749 = vmatpush2.msra.mxu0 0.0
      %750 = vmatprep.subr.mxu0 0.0
      %751 = vmatpush2.msra.mxu0 0.0
      %752 = vmatprep.subr.mxu0 0.0
      %753 = vmatpush2.msra.mxu0 0.0
      %754 = vmatprep.subr.mxu0 0.0
      %755 = vmatpush2.msra.mxu0 0.0
      %756 = vmatprep.subr.mxu0 0.0
      %757 = vmatpush2.msra.mxu0 0.0
      %758 = vmatprep.subr.mxu0 0.0
      %759 = vmatpush2.msra.mxu0 0.0
      %760 = vmatprep.subr.mxu0 0.0
      %761 = vmatpush2.msra.mxu0 0.0
      %762 = vmatprep.subr.mxu0 0.0
      %763 = vmatpush2.msra.mxu0 0.0
      %764 = vmatprep.subr.mxu0 0.0
      %765 = vmatpush2.msra.mxu0 0.0
      %766 = vmatprep.subr.mxu0 0.0
      %767 = vmatpush2.msra.mxu0 0.0
      %768 = vmatprep.mubr.f32.mxu0 0.0
      %769 = vmatmul.mubr.f32.gmra.mxu0 %v677
      %v770 = vpop.f32.mrf.mxu0
      %v771 = vadd.f32 %v702, %v770
      %v772 = vpop.f32.mrf.mxu0
      %773 = vmatprep.mubr.f32.mxu0 0.0
      %774 = vmatmul.mubr.f32.gmra.mxu0 %v678
      %v775 = vpop.f32.mrf.mxu0
      %v776 = vadd.f32 %v702, %v775
      %v777 = vpop.f32.mrf.mxu0
      %778 = vmatprep.mubr.f32.mxu0 0.0
      %779 = vmatmul.mubr.f32.gmra.mxu0 %v679
      %v780 = vpop.f32.mrf.mxu0
      %v781 = vadd.f32 %v702, %v780
      %v782 = vpop.f32.mrf.mxu0
      %783 = vmatprep.mubr.f32.mxu0 0.0
      %784 = vmatmul.mubr.f32.gmra.mxu0 %v680
      %v785 = vpop.f32.mrf.mxu0
      %v786 = vadd.f32 %v702, %v785
      %v787 = vpop.f32.mrf.mxu0
      %788 = vdwg.mxu0
      %v789 = vld [vmem:[%s520] sm:$0xff]
      %v790 = vld [vmem:[%s520 + $0x8] sm:$0xff]
      %v791 = vld [vmem:[%s520 + $0x10] sm:$0xff]
      %v792 = vld [vmem:[%s520 + $0x18] sm:$0xff]
      %v793 = vld [vmem:[%s520 + $0x20] sm:$0xff]
      %v794 = vld [vmem:[%s520 + $0x28] sm:$0xff]
      %v795 = vld [vmem:[%s520 + $0x30] sm:$0xff]
      %v796 = vld [vmem:[%s520 + $0x38] sm:$0xff]
      %v797 = vld [vmem:[%s520 + $0x40] sm:$0xff]
      %v798 = vld [vmem:[%s520 + $0x48] sm:$0xff]
      %v799 = vld [vmem:[%s520 + $0x50] sm:$0xff]
      %v800 = vld [vmem:[%s520 + $0x58] sm:$0xff]
      %v801 = vld [vmem:[%s520 + $0x60] sm:$0xff]
      %v802 = vld [vmem:[%s520 + $0x68] sm:$0xff]
      %v803 = vld [vmem:[%s520 + $0x70] sm:$0xff]
      %v804 = vld [vmem:[%s520 + $0x78] sm:$0xff]
      %805 = vmatprep.subr.mxu0 0.0
      %806 = vmatpush1.msra.mxu0 %v804
      %807 = vmatprep.subr.mxu0 0.0
      %808 = vmatpush1.msra.mxu0 %v803
      %809 = vmatprep.subr.mxu0 0.0
      %810 = vmatpush1.msra.mxu0 %v802
      %811 = vmatprep.subr.mxu0 0.0
      %812 = vmatpush1.msra.mxu0 %v801
      %813 = vmatprep.subr.mxu0 0.0
      %814 = vmatpush1.msra.mxu0 %v800
      %815 = vmatprep.subr.mxu0 0.0
      %816 = vmatpush1.msra.mxu0 %v799
      %817 = vmatprep.subr.mxu0 0.0
      %818 = vmatpush1.msra.mxu0 %v798
      %819 = vmatprep.subr.mxu0 0.0
      %820 = vmatpush1.msra.mxu0 %v797
      %821 = vmatprep.subr.mxu0 0.0
      %822 = vmatpush1.msra.mxu0 %v796
      %823 = vmatprep.subr.mxu0 0.0
      %824 = vmatpush1.msra.mxu0 %v795
      %825 = vmatprep.subr.mxu0 0.0
      %826 = vmatpush1.msra.mxu0 %v794
      %827 = vmatprep.subr.mxu0 0.0
      %828 = vmatpush1.msra.mxu0 %v793
      %829 = vmatprep.subr.mxu0 0.0
      %830 = vmatpush1.msra.mxu0 %v792
      %831 = vmatprep.subr.mxu0 0.0
      %832 = vmatpush1.msra.mxu0 %v791
      %833 = vmatprep.subr.mxu0 0.0
      %834 = vmatpush1.msra.mxu0 %v790
      %835 = vmatprep.subr.mxu0 0.0
      %836 = vmatpush1.msra.mxu0 %v789
      %837 = vmatprep.subr.mxu0 0.0
      %838 = vmatpush2.msra.mxu0 0.0
      %839 = vmatprep.subr.mxu0 0.0
      %840 = vmatpush2.msra.mxu0 0.0
      %841 = vmatprep.subr.mxu0 0.0
      %842 = vmatpush2.msra.mxu0 0.0
      %843 = vmatprep.subr.mxu0 0.0
      %844 = vmatpush2.msra.mxu0 0.0
      %845 = vmatprep.subr.mxu0 0.0
      %846 = vmatpush2.msra.mxu0 0.0
      %847 = vmatprep.subr.mxu0 0.0
      %848 = vmatpush2.msra.mxu0 0.0
      %849 = vmatprep.subr.mxu0 0.0
      %850 = vmatpush2.msra.mxu0 0.0
      %851 = vmatprep.subr.mxu0 0.0
      %852 = vmatpush2.msra.mxu0 0.0
      %853 = vmatprep.subr.mxu0 0.0
      %854 = vmatpush2.msra.mxu0 0.0
      %855 = vmatprep.subr.mxu0 0.0
      %856 = vmatpush2.msra.mxu0 0.0
      %857 = vmatprep.subr.mxu0 0.0
      %858 = vmatpush2.msra.mxu0 0.0
      %859 = vmatprep.subr.mxu0 0.0
      %860 = vmatpush2.msra.mxu0 0.0
      %861 = vmatprep.subr.mxu0 0.0
      %862 = vmatpush2.msra.mxu0 0.0
      %863 = vmatprep.subr.mxu0 0.0
      %864 = vmatpush2.msra.mxu0 0.0
      %865 = vmatprep.subr.mxu0 0.0
      %866 = vmatpush2.msra.mxu0 0.0
      %867 = vmatprep.subr.mxu0 0.0
      %868 = vmatpush2.msra.mxu0 0.0
      %869 = vmatprep.mubr.f32.mxu0 0.0
      %870 = vmatmul.mubr.f32.gmra.mxu0 %v569
      %v871 = vpop.f32.mrf.mxu0
      %v872 = vadd.f32 0.0, %v871
      %v873 = vpop.f32.mrf.mxu0
      %874 = vmatprep.mubr.f32.mxu0 0.0
      %875 = vmatmul.mubr.f32.gmra.mxu0 %v570
      %v876 = vpop.f32.mrf.mxu0
      %v877 = vadd.f32 0.0, %v876
      %v878 = vpop.f32.mrf.mxu0
      %879 = vmatprep.mubr.f32.mxu0 0.0
      %880 = vmatmul.mubr.f32.gmra.mxu0 %v571
      %v881 = vpop.f32.mrf.mxu0
      %v882 = vadd.f32 0.0, %v881
      %v883 = vpop.f32.mrf.mxu0
      %884 = vmatprep.mubr.f32.mxu0 0.0
      %885 = vmatmul.mubr.f32.gmra.mxu0 %v572
      %v886 = vpop.f32.mrf.mxu0
      %v887 = vadd.f32 0.0, %v886
      %v888 = vpop.f32.mrf.mxu0
      %889 = vdwg.mxu0
      %v890 = vadd.f32 %v771, %v872
      %v891 = vadd.f32 %v776, %v877
      %v892 = vadd.f32 %v781, %v882
      %v893 = vadd.f32 %v786, %v887
      %v894 = vmul.f32 %v890, %v890
      %v895 = vmul.f32 %v891, %v891
      %v896 = vmul.f32 %v892, %v892
      %v897 = vmul.f32 %v893, %v893
      %898 = vadd.xlane.f32.xlu0 %v894
      %v899 = vpop.xlane.xlu0 %898
      %900 = vadd.xlane.f32.xlu0 %v895
      %v901 = vpop.xlane.xlu0 %900
      %902 = vadd.xlane.f32.xlu0 %v896
      %v903 = vpop.xlane.xlu0 %902
      %904 = vadd.xlane.f32.xlu0 %v897
      %v905 = vpop.xlane.xlu0 %904
      %v906 = vmax.f32 %v899, 1e-24
      %v907 = vmax.f32 %v901, 1e-24
      %v908 = vmax.f32 %v903, 1e-24
      %v909 = vmax.f32 %v905, 1e-24
      %v910 = vrsqrt.pop %v906
      %v911 = vrsqrt.pop %v907
      %v912 = vrsqrt.pop %v908
      %v913 = vrsqrt.pop %v909
      %v914 = vmul.f32 %v890, %v910
      %v915 = vmul.f32 %v891, %v911
      %v916 = vmul.f32 %v892, %v912
      %v917 = vmul.f32 %v893, %v913
      %v918 = vmax.f32 %v914, 0.0
      %v919 = vmax.f32 %v915, 0.0
      %v920 = vmax.f32 %v916, 0.0
      %v921 = vmax.f32 %v917, 0.0
      %s922 = smul.u32 %s560, 32
      %s923 = scalar_lea.vmem [#allocation2], %s922
      %s924 = scalar_lea.vmem %s923, %s561 [#allocation2]
      %925 = vst [vmem:[%s924] sm:$0xff] %v918
      %926 = vst [vmem:[%s924 + $0x8] sm:$0xff] %v919
      %927 = vst [vmem:[%s924 + $0x10] sm:$0xff] %v920
      %928 = vst [vmem:[%s924 + $0x18] sm:$0xff] %v921
      %p929 = scmp.eq.s32.totalorder %s29, 2
      %p930 = pnand %p929, %p523
      %p931 = pneg %p930
      // Predicated region
      $region81: #{graphsage_forward.1} parent=75 // pred_check
        _
      $region82: #{graphsage_forward.1} parent=75 // pred_check_branch
        %933 = sbr.rel (%p930) target = $region84
      $region83: #{graphsage_forward.1} parent=75 // pred_region
        %v934 = vld [vmem:[%s923] sm:$0xff]
        %v935 = vld [vmem:[%s923 + $0x8] sm:$0xff]
        %v936 = vld [vmem:[%s923 + $0x10] sm:$0xff]
        %v937 = vld [vmem:[%s923 + $0x18] sm:$0xff]
        %v938 = vld [vmem:[%s2] sm:$0xff]
        %v939 = vld [vmem:[%s2 + $0x8] sm:$0xff]
        %v940 = vld [vmem:[%s2 + $0x10] sm:$0xff]
        %v941 = vld [vmem:[%s2 + $0x18] sm:$0xff]
        %vm942 = vcmp.gt.f32.partialorder %v938, 0.0
        %vm943 = vcmp.gt.f32.partialorder %v939, 0.0
        %vm944 = vcmp.gt.f32.partialorder %v940, 0.0
        %vm945 = vcmp.gt.f32.partialorder %v941, 0.0
        %v946 = vsel %vm942, 1, 0
        %v947 = vsel %vm943, 1, 0
        %v948 = vsel %vm944, 1, 0
        %v949 = vsel %vm945, 1, 0
        %950 = vset.pattern.permute.xlu0 0
        %951 = vperm.xlu0 %950, %v946
        %v952 = vpop.permute.xlu0 %951
        %953 = vset.pattern.permute.xlu0 0
        %954 = vperm.xlu0 %953, %v947
        %v955 = vpop.permute.xlu0 %954
        %956 = vset.pattern.permute.xlu0 0
        %957 = vperm.xlu0 %956, %v948
        %v958 = vpop.permute.xlu0 %957
        %959 = vset.pattern.permute.xlu0 0
        %960 = vperm.xlu0 %959, %v949
        %v961 = vpop.permute.xlu0 %960
        %vm962 = vcmp.eq.s32.totalorder %v952, 1
        %vm963 = vcmp.eq.s32.totalorder %v955, 1
        %vm964 = vcmp.eq.s32.totalorder %v958, 1
        %vm965 = vcmp.eq.s32.totalorder %v961, 1
        %v966 = vsel %vm962, %v934, 0.0
        %v967 = vsel %vm963, %v935, 0.0
        %v968 = vsel %vm964, %v936, 0.0
        %v969 = vsel %vm965, %v937, 0.0
        %v970 = vmax.f32 %v966, %v967
        %v971 = vmax.f32 %v968, %v969
        %v972 = vmax.f32 %v970, %v971
        %v973 = vrot.slane %v972, 4
        %v974 = vmax.f32 %v972, %v973
        %v975 = vrot.slane %v974, 2
        %v976 = vmax.f32 %v974, %v975
        %v977 = vrot.slane %v976, 1
        %v978 = vmax.f32 %v976, %v977
        %s979 = scalar_lea.vmem %s2, 32
        %v980 = vld [vmem:[%s979] sm:$0xff]
        %v981 = vld [vmem:[%s979 + $0x8] sm:$0xff]
        %v982 = vld [vmem:[%s979 + $0x10] sm:$0xff]
        %v983 = vld [vmem:[%s979 + $0x18] sm:$0xff]
        %vm984 = vcmp.gt.f32.partialorder %v980, 0.0
        %vm985 = vcmp.gt.f32.partialorder %v981, 0.0
        %vm986 = vcmp.gt.f32.partialorder %v982, 0.0
        %vm987 = vcmp.gt.f32.partialorder %v983, 0.0
        %v988 = vsel %vm984, 1, 0
        %v989 = vsel %vm985, 1, 0
        %v990 = vsel %vm986, 1, 0
        %v991 = vsel %vm987, 1, 0
        %992 = vset.pattern.permute.xlu0 0
        %993 = vperm.xlu0 %992, %v988
        %v994 = vpop.permute.xlu0 %993
        %995 = vset.pattern.permute.xlu0 0
        %996 = vperm.xlu0 %995, %v989
        %v997 = vpop.permute.xlu0 %996
        %998 = vset.pattern.permute.xlu0 0
        %999 = vperm.xlu0 %998, %v990
        %v1000 = vpop.permute.xlu0 %999
        %1001 = vset.pattern.permute.xlu0 0
        %1002 = vperm.xlu0 %1001, %v991
        %v1003 = vpop.permute.xlu0 %1002
        %vm1004 = vcmp.eq.s32.totalorder %v994, 1
        %vm1005 = vcmp.eq.s32.totalorder %v997, 1
        %vm1006 = vcmp.eq.s32.totalorder %v1000, 1
        %vm1007 = vcmp.eq.s32.totalorder %v1003, 1
        %v1008 = vsel %vm1004, %v934, 0.0
        %v1009 = vsel %vm1005, %v935, 0.0
        %v1010 = vsel %vm1006, %v936, 0.0
        %v1011 = vsel %vm1007, %v937, 0.0
        %v1012 = vmax.f32 %v1008, %v1009
        %v1013 = vmax.f32 %v1010, %v1011
        %v1014 = vmax.f32 %v1012, %v1013
        %v1015 = vrot.slane %v1014, 4
        %v1016 = vmax.f32 %v1014, %v1015
        %v1017 = vrot.slane %v1016, 2
        %v1018 = vmax.f32 %v1016, %v1017
        %v1019 = vrot.slane %v1018, 1
        %v1020 = vmax.f32 %v1018, %v1019
        %s1021 = scalar_lea.vmem %s2, 64
        %v1022 = vld [vmem:[%s1021] sm:$0xff]
        %v1023 = vld [vmem:[%s1021 + $0x8] sm:$0xff]
        %v1024 = vld [vmem:[%s1021 + $0x10] sm:$0xff]
        %v1025 = vld [vmem:[%s1021 + $0x18] sm:$0xff]
        %vm1026 = vcmp.gt.f32.partialorder %v1022, 0.0
        %vm1027 = vcmp.gt.f32.partialorder %v1023, 0.0
        %vm1028 = vcmp.gt.f32.partialorder %v1024, 0.0
        %vm1029 = vcmp.gt.f32.partialorder %v1025, 0.0
        %v1030 = vsel %vm1026, 1, 0
        %v1031 = vsel %vm1027, 1, 0
        %v1032 = vsel %vm1028, 1, 0
        %v1033 = vsel %vm1029, 1, 0
        %1034 = vset.pattern.permute.xlu0 0
        %1035 = vperm.xlu0 %1034, %v1030
        %v1036 = vpop.permute.xlu0 %1035
        %1037 = vset.pattern.permute.xlu0 0
        %1038 = vperm.xlu0 %1037, %v1031
        %v1039 = vpop.permute.xlu0 %1038
        %1040 = vset.pattern.permute.xlu0 0
        %1041 = vperm.xlu0 %1040, %v1032
        %v1042 = vpop.permute.xlu0 %1041
        %1043 = vset.pattern.permute.xlu0 0
        %1044 = vperm.xlu0 %1043, %v1033
        %v1045 = vpop.permute.xlu0 %1044
        %vm1046 = vcmp.eq.s32.totalorder %v1036, 1
        %vm1047 = vcmp.eq.s32.totalorder %v1039, 1
        %vm1048 = vcmp.eq.s32.totalorder %v1042, 1
        %vm1049 = vcmp.eq.s32.totalorder %v1045, 1
        %v1050 = vsel %vm1046, %v934, 0.0
        %v1051 = vsel %vm1047, %v935, 0.0
        %v1052 = vsel %vm1048, %v936, 0.0
        %v1053 = vsel %vm1049, %v937, 0.0
        %v1054 = vmax.f32 %v1050, %v1051
        %v1055 = vmax.f32 %v1052, %v1053
        %v1056 = vmax.f32 %v1054, %v1055
        %v1057 = vrot.slane %v1056, 4
        %v1058 = vmax.f32 %v1056, %v1057
        %v1059 = vrot.slane %v1058, 2
        %v1060 = vmax.f32 %v1058, %v1059
        %v1061 = vrot.slane %v1060, 1
        %v1062 = vmax.f32 %v1060, %v1061
        %s1063 = scalar_lea.vmem %s2, 96
        %v1064 = vld [vmem:[%s1063] sm:$0xff]
        %v1065 = vld [vmem:[%s1063 + $0x8] sm:$0xff]
        %v1066 = vld [vmem:[%s1063 + $0x10] sm:$0xff]
        %v1067 = vld [vmem:[%s1063 + $0x18] sm:$0xff]
        %vm1068 = vcmp.gt.f32.partialorder %v1064, 0.0
        %vm1069 = vcmp.gt.f32.partialorder %v1065, 0.0
        %vm1070 = vcmp.gt.f32.partialorder %v1066, 0.0
        %vm1071 = vcmp.gt.f32.partialorder %v1067, 0.0
        %v1072 = vsel %vm1068, 1, 0
        %v1073 = vsel %vm1069, 1, 0
        %v1074 = vsel %vm1070, 1, 0
        %v1075 = vsel %vm1071, 1, 0
        %1076 = vset.pattern.permute.xlu0 0
        %1077 = vperm.xlu0 %1076, %v1072
        %v1078 = vpop.permute.xlu0 %1077
        %1079 = vset.pattern.permute.xlu0 0
        %1080 = vperm.xlu0 %1079, %v1073
        %v1081 = vpop.permute.xlu0 %1080
        %1082 = vset.pattern.permute.xlu0 0
        %1083 = vperm.xlu0 %1082, %v1074
        %v1084 = vpop.permute.xlu0 %1083
        %1085 = vset.pattern.permute.xlu0 0
        %1086 = vperm.xlu0 %1085, %v1075
        %v1087 = vpop.permute.xlu0 %1086
        %vm1088 = vcmp.eq.s32.totalorder %v1078, 1
        %vm1089 = vcmp.eq.s32.totalorder %v1081, 1
        %vm1090 = vcmp.eq.s32.totalorder %v1084, 1
        %vm1091 = vcmp.eq.s32.totalorder %v1087, 1
        %v1092 = vsel %vm1088, %v934, 0.0
        %v1093 = vsel %vm1089, %v935, 0.0
        %v1094 = vsel %vm1090, %v936, 0.0
        %v1095 = vsel %vm1091, %v937, 0.0
        %v1096 = vmax.f32 %v1092, %v1093
        %v1097 = vmax.f32 %v1094, %v1095
        %v1098 = vmax.f32 %v1096, %v1097
        %v1099 = vrot.slane %v1098, 4
        %v1100 = vmax.f32 %v1098, %v1099
        %v1101 = vrot.slane %v1100, 2
        %v1102 = vmax.f32 %v1100, %v1101
        %v1103 = vrot.slane %v1102, 1
        %v1104 = vmax.f32 %v1102, %v1103
        %vm1105 = vcmask 1040384
        %v1106 = vsel %vm1105, %v978, %v1020
        %vm1107 = vcmask 1041408
        %v1108 = vsel %vm1107, %v1106, %v1062
        %vm1109 = vcmask 1042432
        %v1110 = vsel %vm1109, %v1108, %v1104
        %v1111 = vld [vmem:[%s7] sm:$0xff]
        %v1112 = vld [vmem:[%s7 + $0x8] sm:$0xff]
        %v1113 = vld [vmem:[%s7 + $0x10] sm:$0xff]
        %v1114 = vld [vmem:[%s7 + $0x18] sm:$0xff]
        %v1115 = vld [vmem:[%s7 + $0x20] sm:$0xff]
        %v1116 = vld [vmem:[%s7 + $0x28] sm:$0xff]
        %v1117 = vld [vmem:[%s7 + $0x30] sm:$0xff]
        %v1118 = vld [vmem:[%s7 + $0x38] sm:$0xff]
        %v1119 = vld [vmem:[%s7 + $0x40] sm:$0xff]
        %v1120 = vld [vmem:[%s7 + $0x48] sm:$0xff]
        %v1121 = vld [vmem:[%s7 + $0x50] sm:$0xff]
        %v1122 = vld [vmem:[%s7 + $0x58] sm:$0xff]
        %v1123 = vld [vmem:[%s7 + $0x60] sm:$0xff]
        %v1124 = vld [vmem:[%s7 + $0x68] sm:$0xff]
        %v1125 = vld [vmem:[%s7 + $0x70] sm:$0xff]
        %v1126 = vld [vmem:[%s7 + $0x78] sm:$0xff]
        %v1127 = vld [vmem:[%s8] sm:$0x1]
        %v1129 = vlaneseq
        %v1130 = vshrl.u32 %v1129, 7
        %v1131 = vsub.s32 0, %v1130
        %v1132 = vrot.slane %v1127, %v1131
        %1134 = vmatprep.subr.mxu0 0.0
        %1135 = vmatpush1.msra.mxu0 %v1126
        %1136 = vmatprep.subr.mxu0 0.0
        %1137 = vmatpush1.msra.mxu0 %v1125
        %1138 = vmatprep.subr.mxu0 0.0
        %1139 = vmatpush1.msra.mxu0 %v1124
        %1140 = vmatprep.subr.mxu0 0.0
        %1141 = vmatpush1.msra.mxu0 %v1123
        %1142 = vmatprep.subr.mxu0 0.0
        %1143 = vmatpush1.msra.mxu0 %v1122
        %1144 = vmatprep.subr.mxu0 0.0
        %1145 = vmatpush1.msra.mxu0 %v1121
        %1146 = vmatprep.subr.mxu0 0.0
        %1147 = vmatpush1.msra.mxu0 %v1120
        %1148 = vmatprep.subr.mxu0 0.0
        %1149 = vmatpush1.msra.mxu0 %v1119
        %1150 = vmatprep.subr.mxu0 0.0
        %1151 = vmatpush1.msra.mxu0 %v1118
        %1152 = vmatprep.subr.mxu0 0.0
        %1153 = vmatpush1.msra.mxu0 %v1117
        %1154 = vmatprep.subr.mxu0 0.0
        %1155 = vmatpush1.msra.mxu0 %v1116
        %1156 = vmatprep.subr.mxu0 0.0
        %1157 = vmatpush1.msra.mxu0 %v1115
        %1158 = vmatprep.subr.mxu0 0.0
        %1159 = vmatpush1.msra.mxu0 %v1114
        %1160 = vmatprep.subr.mxu0 0.0
        %1161 = vmatpush1.msra.mxu0 %v1113
        %1162 = vmatprep.subr.mxu0 0.0
        %1163 = vmatpush1.msra.mxu0 %v1112
        %1164 = vmatprep.subr.mxu0 0.0
        %1165 = vmatpush1.msra.mxu0 %v1111
        %1166 = vmatprep.subr.mxu0 0.0
        %1167 = vmatpush2.msra.mxu0 0.0
        %1168 = vmatprep.subr.mxu0 0.0
        %1169 = vmatpush2.msra.mxu0 0.0
        %1170 = vmatprep.subr.mxu0 0.0
        %1171 = vmatpush2.msra.mxu0 0.0
        %1172 = vmatprep.subr.mxu0 0.0
        %1173 = vmatpush2.msra.mxu0 0.0
        %1174 = vmatprep.subr.mxu0 0.0
        %1175 = vmatpush2.msra.mxu0 0.0
        %1176 = vmatprep.subr.mxu0 0.0
        %1177 = vmatpush2.msra.mxu0 0.0
        %1178 = vmatprep.subr.mxu0 0.0
        %1179 = vmatpush2.msra.mxu0 0.0
        %1180 = vmatprep.subr.mxu0 0.0
        %1181 = vmatpush2.msra.mxu0 0.0
        %1182 = vmatprep.subr.mxu0 0.0
        %1183 = vmatpush2.msra.mxu0 0.0
        %1184 = vmatprep.subr.mxu0 0.0
        %1185 = vmatpush2.msra.mxu0 0.0
        %1186 = vmatprep.subr.mxu0 0.0
        %1187 = vmatpush2.msra.mxu0 0.0
        %1188 = vmatprep.subr.mxu0 0.0
        %1189 = vmatpush2.msra.mxu0 0.0
        %1190 = vmatprep.subr.mxu0 0.0
        %1191 = vmatpush2.msra.mxu0 0.0
        %1192 = vmatprep.subr.mxu0 0.0
        %1193 = vmatpush2.msra.mxu0 0.0
        %1194 = vmatprep.subr.mxu0 0.0
        %1195 = vmatpush2.msra.mxu0 0.0
        %1196 = vmatprep.subr.mxu0 0.0
        %1197 = vmatpush2.msra.mxu0 0.0
        %1198 = vmatprep.mubr.f32.mxu0 0.0
        %1199 = vmatmul.mubr.f32.gmra.mxu0 %v1110
        %v1200 = vpop.f32.mrf.mxu0
        %v1201 = vadd.f32 %v1132, %v1200
        %v1202 = vpop.f32.mrf.mxu0
        %1203 = vdwg.mxu0
        %v1204 = vmax.f32 %v1201, 0.0
        %v1205 = vld [vmem:[%s3] sm:$0xf]
        %v1206 = vld [vmem:[%s9] sm:$0xff]
        %v1207 = vld [vmem:[%s9 + $0x8] sm:$0xff]
        %v1208 = vld [vmem:[%s9 + $0x10] sm:$0xff]
        %v1209 = vld [vmem:[%s9 + $0x18] sm:$0xff]
        %v1210 = vld [vmem:[%s9 + $0x20] sm:$0xff]
        %v1211 = vld [vmem:[%s9 + $0x28] sm:$0xff]
        %v1212 = vld [vmem:[%s9 + $0x30] sm:$0xff]
        %v1213 = vld [vmem:[%s9 + $0x38] sm:$0xff]
        %v1214 = vld [vmem:[%s9 + $0x40] sm:$0xff]
        %v1215 = vld [vmem:[%s9 + $0x48] sm:$0xff]
        %v1216 = vld [vmem:[%s9 + $0x50] sm:$0xff]
        %v1217 = vld [vmem:[%s9 + $0x58] sm:$0xff]
        %v1218 = vld [vmem:[%s9 + $0x60] sm:$0xff]
        %v1219 = vld [vmem:[%s9 + $0x68] sm:$0xff]
        %v1220 = vld [vmem:[%s9 + $0x70] sm:$0xff]
        %v1221 = vld [vmem:[%s9 + $0x78] sm:$0xff]
        %v1222 = vld [vmem:[%s10] sm:$0x1]
        %v1224 = vlaneseq
        %v1225 = vshrl.u32 %v1224, 7
        %v1226 = vsub.s32 0, %v1225
        %v1227 = vrot.slane %v1222, %v1226
        %1229 = vmatprep.subr.mxu0 0.0
        %1230 = vmatpush1.msra.mxu0 %v1221
        %1231 = vmatprep.subr.mxu0 0.0
        %1232 = vmatpush1.msra.mxu0 %v1220
        %1233 = vmatprep.subr.mxu0 0.0
        %1234 = vmatpush1.msra.mxu0 %v1219
        %1235 = vmatprep.subr.mxu0 0.0
        %1236 = vmatpush1.msra.mxu0 %v1218
        %1237 = vmatprep.subr.mxu0 0.0
        %1238 = vmatpush1.msra.mxu0 %v1217
        %1239 = vmatprep.subr.mxu0 0.0
        %1240 = vmatpush1.msra.mxu0 %v1216
        %1241 = vmatprep.subr.mxu0 0.0
        %1242 = vmatpush1.msra.mxu0 %v1215
        %1243 = vmatprep.subr.mxu0 0.0
        %1244 = vmatpush1.msra.mxu0 %v1214
        %1245 = vmatprep.subr.mxu0 0.0
        %1246 = vmatpush1.msra.mxu0 %v1213
        %1247 = vmatprep.subr.mxu0 0.0
        %1248 = vmatpush1.msra.mxu0 %v1212
        %1249 = vmatprep.subr.mxu0 0.0
        %1250 = vmatpush1.msra.mxu0 %v1211
        %1251 = vmatprep.subr.mxu0 0.0
        %1252 = vmatpush1.msra.mxu0 %v1210
        %1253 = vmatprep.subr.mxu0 0.0
        %1254 = vmatpush1.msra.mxu0 %v1209
        %1255 = vmatprep.subr.mxu0 0.0
        %1256 = vmatpush1.msra.mxu0 %v1208
        %1257 = vmatprep.subr.mxu0 0.0
        %1258 = vmatpush1.msra.mxu0 %v1207
        %1259 = vmatprep.subr.mxu0 0.0
        %1260 = vmatpush1.msra.mxu0 %v1206
        %1261 = vmatprep.subr.mxu0 0.0
        %1262 = vmatpush2.msra.mxu0 0.0
        %1263 = vmatprep.subr.mxu0 0.0
        %1264 = vmatpush2.msra.mxu0 0.0
        %1265 = vmatprep.subr.mxu0 0.0
        %1266 = vmatpush2.msra.mxu0 0.0
        %1267 = vmatprep.subr.mxu0 0.0
        %1268 = vmatpush2.msra.mxu0 0.0
        %1269 = vmatprep.subr.mxu0 0.0
        %1270 = vmatpush2.msra.mxu0 0.0
        %1271 = vmatprep.subr.mxu0 0.0
        %1272 = vmatpush2.msra.mxu0 0.0
        %1273 = vmatprep.subr.mxu0 0.0
        %1274 = vmatpush2.msra.mxu0 0.0
        %1275 = vmatprep.subr.mxu0 0.0
        %1276 = vmatpush2.msra.mxu0 0.0
        %1277 = vmatprep.subr.mxu0 0.0
        %1278 = vmatpush2.msra.mxu0 0.0
        %1279 = vmatprep.subr.mxu0 0.0
        %1280 = vmatpush2.msra.mxu0 0.0
        %1281 = vmatprep.subr.mxu0 0.0
        %1282 = vmatpush2.msra.mxu0 0.0
        %1283 = vmatprep.subr.mxu0 0.0
        %1284 = vmatpush2.msra.mxu0 0.0
        %1285 = vmatprep.subr.mxu0 0.0
        %1286 = vmatpush2.msra.mxu0 0.0
        %1287 = vmatprep.subr.mxu0 0.0
        %1288 = vmatpush2.msra.mxu0 0.0
        %1289 = vmatprep.subr.mxu0 0.0
        %1290 = vmatpush2.msra.mxu0 0.0
        %1291 = vmatprep.subr.mxu0 0.0
        %1292 = vmatpush2.msra.mxu0 0.0
        %1293 = vmatprep.mubr.f32.mxu0 0.0
        %1294 = vmatmul.mubr.f32.gmra.mxu0 %v1205
        %v1295 = vpop.f32.mrf.mxu0
        %v1296 = vadd.f32 %v1227, %v1295
        %v1297 = vpop.f32.mrf.mxu0
        %1298 = vdwg.mxu0
        %v1299 = vmax.f32 %v1296, 0.0
        %v1300 = vld [vmem:[%s11] sm:$0xff]
        %v1301 = vld [vmem:[%s11 + $0x8] sm:$0xff]
        %v1302 = vld [vmem:[%s11 + $0x10] sm:$0xff]
        %v1303 = vld [vmem:[%s11 + $0x18] sm:$0xff]
        %v1304 = vld [vmem:[%s11 + $0x20] sm:$0xff]
        %v1305 = vld [vmem:[%s11 + $0x28] sm:$0xff]
        %v1306 = vld [vmem:[%s11 + $0x30] sm:$0xff]
        %v1307 = vld [vmem:[%s11 + $0x38] sm:$0xff]
        %v1308 = vld [vmem:[%s11 + $0x40] sm:$0xff]
        %v1309 = vld [vmem:[%s11 + $0x48] sm:$0xff]
        %v1310 = vld [vmem:[%s11 + $0x50] sm:$0xff]
        %v1311 = vld [vmem:[%s11 + $0x58] sm:$0xff]
        %v1312 = vld [vmem:[%s11 + $0x60] sm:$0xff]
        %v1313 = vld [vmem:[%s11 + $0x68] sm:$0xff]
        %v1314 = vld [vmem:[%s11 + $0x70] sm:$0xff]
        %v1315 = vld [vmem:[%s11 + $0x78] sm:$0xff]
        %v1316 = vld [vmem:[%s12] sm:$0xff]
        %v1317 = vld [vmem:[%s12 + $0x8] sm:$0xff]
        %v1318 = vld [vmem:[%s12 + $0x10] sm:$0xff]
        %v1319 = vld [vmem:[%s12 + $0x18] sm:$0xff]
        %v1320 = vld [vmem:[%s12 + $0x20] sm:$0xff]
        %v1321 = vld [vmem:[%s12 + $0x28] sm:$0xff]
        %v1322 = vld [vmem:[%s12 + $0x30] sm:$0xff]
        %v1323 = vld [vmem:[%s12 + $0x38] sm:$0xff]
        %v1324 = vld [vmem:[%s12 + $0x40] sm:$0xff]
        %v1325 = vld [vmem:[%s12 + $0x48] sm:$0xff]
        %v1326 = vld [vmem:[%s12 + $0x50] sm:$0xff]
        %v1327 = vld [vmem:[%s12 + $0x58] sm:$0xff]
        %v1328 = vld [vmem:[%s12 + $0x60] sm:$0xff]
        %v1329 = vld [vmem:[%s12 + $0x68] sm:$0xff]
        %v1330 = vld [vmem:[%s12 + $0x70] sm:$0xff]
        %v1331 = vld [vmem:[%s12 + $0x78] sm:$0xff]
        %1332 = vmatprep.subr.mxu0 0.0
        %1333 = vmatpush1.msra.mxu0 %v1331
        %1334 = vmatprep.subr.mxu0 0.0
        %1335 = vmatpush1.msra.mxu0 %v1330
        %1336 = vmatprep.subr.mxu0 0.0
        %1337 = vmatpush1.msra.mxu0 %v1329
        %1338 = vmatprep.subr.mxu0 0.0
        %1339 = vmatpush1.msra.mxu0 %v1328
        %1340 = vmatprep.subr.mxu0 0.0
        %1341 = vmatpush1.msra.mxu0 %v1327
        %1342 = vmatprep.subr.mxu0 0.0
        %1343 = vmatpush1.msra.mxu0 %v1326
        %1344 = vmatprep.subr.mxu0 0.0
        %1345 = vmatpush1.msra.mxu0 %v1325
        %1346 = vmatprep.subr.mxu0 0.0
        %1347 = vmatpush1.msra.mxu0 %v1324
        %1348 = vmatprep.subr.mxu0 0.0
        %1349 = vmatpush1.msra.mxu0 %v1323
        %1350 = vmatprep.subr.mxu0 0.0
        %1351 = vmatpush1.msra.mxu0 %v1322
        %1352 = vmatprep.subr.mxu0 0.0
        %1353 = vmatpush1.msra.mxu0 %v1321
        %1354 = vmatprep.subr.mxu0 0.0
        %1355 = vmatpush1.msra.mxu0 %v1320
        %1356 = vmatprep.subr.mxu0 0.0
        %1357 = vmatpush1.msra.mxu0 %v1319
        %1358 = vmatprep.subr.mxu0 0.0
        %1359 = vmatpush1.msra.mxu0 %v1318
        %1360 = vmatprep.subr.mxu0 0.0
        %1361 = vmatpush1.msra.mxu0 %v1317
        %1362 = vmatprep.subr.mxu0 0.0
        %1363 = vmatpush1.msra.mxu0 %v1316
        %1364 = vmatprep.subr.mxu0 0.0
        %1365 = vmatpush2.msra.mxu0 0.0
        %1366 = vmatprep.subr.mxu0 0.0
        %1367 = vmatpush2.msra.mxu0 0.0
        %1368 = vmatprep.subr.mxu0 0.0
        %1369 = vmatpush2.msra.mxu0 0.0
        %1370 = vmatprep.subr.mxu0 0.0
        %1371 = vmatpush2.msra.mxu0 0.0
        %1372 = vmatprep.subr.mxu0 0.0
        %1373 = vmatpush2.msra.mxu0 0.0
        %1374 = vmatprep.subr.mxu0 0.0
        %1375 = vmatpush2.msra.mxu0 0.0
        %1376 = vmatprep.subr.mxu0 0.0
        %1377 = vmatpush2.msra.mxu0 0.0
        %1378 = vmatprep.subr.mxu0 0.0
        %1379 = vmatpush2.msra.mxu0 0.0
        %1380 = vmatprep.subr.mxu0 0.0
        %1381 = vmatpush2.msra.mxu0 0.0
        %1382 = vmatprep.subr.mxu0 0.0
        %1383 = vmatpush2.msra.mxu0 0.0
        %1384 = vmatprep.subr.mxu0 0.0
        %1385 = vmatpush2.msra.mxu0 0.0
        %1386 = vmatprep.subr.mxu0 0.0
        %1387 = vmatpush2.msra.mxu0 0.0
        %1388 = vmatprep.subr.mxu0 0.0
        %1389 = vmatpush2.msra.mxu0 0.0
        %1390 = vmatprep.subr.mxu0 0.0
        %1391 = vmatpush2.msra.mxu0 0.0
        %1392 = vmatprep.subr.mxu0 0.0
        %1393 = vmatpush2.msra.mxu0 0.0
        %1394 = vmatprep.subr.mxu0 0.0
        %1395 = vmatpush2.msra.mxu0 0.0
        %1396 = vmatprep.mubr.f32.mxu0 0.0
        %1397 = vmatmul.mubr.f32.gmra.mxu0 %v1299
        %v1398 = vpop.f32.mrf.mxu0
        %v1399 = vadd.f32 0.0, %v1398
        %v1400 = vpop.f32.mrf.mxu0
        %1401 = vdwg.mxu0
        %1402 = vmatprep.subr.mxu0 0.0
        %1403 = vmatpush1.msra.mxu0 %v1315
        %1404 = vmatprep.subr.mxu0 0.0
        %1405 = vmatpush1.msra.mxu0 %v1314
        %1406 = vmatprep.subr.mxu0 0.0
        %1407 = vmatpush1.msra.mxu0 %v1313
        %1408 = vmatprep.subr.mxu0 0.0
        %1409 = vmatpush1.msra.mxu0 %v1312
        %1410 = vmatprep.subr.mxu0 0.0
        %1411 = vmatpush1.msra.mxu0 %v1311
        %1412 = vmatprep.subr.mxu0 0.0
        %1413 = vmatpush1.msra.mxu0 %v1310
        %1414 = vmatprep.subr.mxu0 0.0
        %1415 = vmatpush1.msra.mxu0 %v1309
        %1416 = vmatprep.subr.mxu0 0.0
        %1417 = vmatpush1.msra.mxu0 %v1308
        %1418 = vmatprep.subr.mxu0 0.0
        %1419 = vmatpush1.msra.mxu0 %v1307
        %1420 = vmatprep.subr.mxu0 0.0
        %1421 = vmatpush1.msra.mxu0 %v1306
        %1422 = vmatprep.subr.mxu0 0.0
        %1423 = vmatpush1.msra.mxu0 %v1305
        %1424 = vmatprep.subr.mxu0 0.0
        %1425 = vmatpush1.msra.mxu0 %v1304
        %1426 = vmatprep.subr.mxu0 0.0
        %1427 = vmatpush1.msra.mxu0 %v1303
        %1428 = vmatprep.subr.mxu0 0.0
        %1429 = vmatpush1.msra.mxu0 %v1302
        %1430 = vmatprep.subr.mxu0 0.0
        %1431 = vmatpush1.msra.mxu0 %v1301
        %1432 = vmatprep.subr.mxu0 0.0
        %1433 = vmatpush1.msra.mxu0 %v1300
        %1434 = vmatprep.subr.mxu0 0.0
        %1435 = vmatpush2.msra.mxu0 0.0
        %1436 = vmatprep.subr.mxu0 0.0
        %1437 = vmatpush2.msra.mxu0 0.0
        %1438 = vmatprep.subr.mxu0 0.0
        %1439 = vmatpush2.msra.mxu0 0.0
        %1440 = vmatprep.subr.mxu0 0.0
        %1441 = vmatpush2.msra.mxu0 0.0
        %1442 = vmatprep.subr.mxu0 0.0
        %1443 = vmatpush2.msra.mxu0 0.0
        %1444 = vmatprep.subr.mxu0 0.0
        %1445 = vmatpush2.msra.mxu0 0.0
        %1446 = vmatprep.subr.mxu0 0.0
        %1447 = vmatpush2.msra.mxu0 0.0
        %1448 = vmatprep.subr.mxu0 0.0
        %1449 = vmatpush2.msra.mxu0 0.0
        %1450 = vmatprep.subr.mxu0 0.0
        %1451 = vmatpush2.msra.mxu0 0.0
        %1452 = vmatprep.subr.mxu0 0.0
        %1453 = vmatpush2.msra.mxu0 0.0
        %1454 = vmatprep.subr.mxu0 0.0
        %1455 = vmatpush2.msra.mxu0 0.0
        %1456 = vmatprep.subr.mxu0 0.0
        %1457 = vmatpush2.msra.mxu0 0.0
        %1458 = vmatprep.subr.mxu0 0.0
        %1459 = vmatpush2.msra.mxu0 0.0
        %1460 = vmatprep.subr.mxu0 0.0
        %1461 = vmatpush2.msra.mxu0 0.0
        %1462 = vmatprep.subr.mxu0 0.0
        %1463 = vmatpush2.msra.mxu0 0.0
        %1464 = vmatprep.subr.mxu0 0.0
        %1465 = vmatpush2.msra.mxu0 0.0
        %1466 = vmatprep.mubr.f32.mxu0 0.0
        %1467 = vmatmul.mubr.f32.gmra.mxu0 %v1204
        %v1468 = vpop.f32.mrf.mxu0
        %v1469 = vadd.f32 %v1399, %v1468
        %v1470 = vpop.f32.mrf.mxu0
        %1471 = vdwg.mxu0
        %v1472 = vld [vmem:[%s13] sm:$0x1]
        %v1474 = vlaneseq
        %v1475 = vshrl.u32 %v1474, 7
        %v1476 = vsub.s32 0, %v1475
        %v1477 = vrot.slane %v1472, %v1476
        %v1479 = vadd.f32 %v1469, %v1477
        %v1480 = vxor.u32 %v1479, 2147483648
        %v1481 = vmul.f32 %v1480, 1.442695
        %v1482 = vpow.pop %v1481
        %v1483 = vadd.f32 %v1482, 1.0
        %v1484 = vrcp.pop %v1483
        %v1485 = vmul.f32 1.0, %v1484
        %1486 = vst [vmem:[%s14] sm:$0xf] %v1485
      $region84: #{graphsage_forward.1} parent=75 // pred_fallthru
        _
      // Predicated region
      $region85: #{graphsage_forward.1} parent=75 // pred_check
        %p1487 = pneg %p364
      $region86: #{graphsage_forward.1} parent=75 // pred_check_branch
        %1489 = sbr.rel (%p1487) target = $region88
      $region87: #{graphsage_forward.1} parent=75 // pred_region
        _
      $region88: #{graphsage_forward.1} parent=75 // pred_fallthru
        _
      // Predicated region
      $region89: #{graphsage_forward.1} parent=75 // pred_check
        %p1490 = pneg %p364
      $region90: #{graphsage_forward.1} parent=75 // pred_check_branch
        %1492 = sbr.rel (%p1490) target = $region92
      $region91: #{graphsage_forward.1} parent=75 // pred_region
        _
      $region92: #{graphsage_forward.1} parent=75 // pred_fallthru
        _
    $region76: #{graphsage_forward.1} parent=5 // pred_fallthru
      _
    %p1493 = scmp.le.s32.totalorder 2, %s20
    // Predicated region
    $region93: #{graphsage_forward.1} parent=5 // pred_check
      %p1494 = pneg %p1493
    $region94: #{graphsage_forward.1} parent=5 // pred_check_branch
      %1496 = sbr.rel (%p1494) target = $region96
    $region95: #{graphsage_forward.1} parent=5 // pred_region
      %s1497 = ssub.s32 %s20, 2
    $region96: #{graphsage_forward.1} parent=5 // pred_fallthru
      _
  $region6: #{graphsage_forward.1} parent=0 // loop_footer
    %s24 = sadd.s32 1, %s20
  $region7: #{graphsage_forward.1} parent=0 // loop_footer_branch
    %19 = sbr.rel target = $region3
  $region8: #{graphsage_forward.1} parent=0 // loop_exit
    _

</llo_original>
